<compile_context>
chip_gen: v5e
topology: v5e:2x2
jax: 0.10.0
libtpu: 0.0.40
codegen_flags: <defaults>
</compile_context>

<pallas_src>
import functools

import jax
import jax.numpy as jnp
from jax.experimental import pallas as pl
from jax.experimental.pallas import tpu as pltpu

IN_DIM = 2        # z dimension
H_DIM = 400       # logical hidden size (PyTorch h_dim)
OUT_DIM = 2       # logical output dimension
H_PAD = 512       # hidden padded to a multiple of 128 lanes
OUT_PAD = 128     # output padded so stores are lane-dense


def _round_up(x, m):
    return (x + m - 1) // m * m


def _generator_kernel(z_ref,
                      w1_ref, b1_ref,
                      w2_ref, b2_ref,
                      w3_ref, b3_ref,
                      w4_ref, b4_ref,
                      o_ref):
    # ---- Layer 1 (K=2): on the VPU as two broadcast FMAs; a K=2 contraction
    #      would push a nearly empty vmatmul through the MXU.
    z = z_ref[...]                         # (bm, 2)   f32
    w1 = w1_ref[...]                       # (2, 512)  f32
    h = z[:, 0:1] * w1[0:1, :] + z[:, 1:2] * w1[1:2, :] + b1_ref[...]
    h = jnp.maximum(h, 0.0)

    # ---- Layers 2/3: bf16 MXU matmuls, f32 accumulation, f32 elementwise.
    h = jnp.dot(h.astype(jnp.bfloat16), w2_ref[...],
                preferred_element_type=jnp.float32)
    h = jnp.maximum(h + b2_ref[...], 0.0)
    h = jnp.dot(h.astype(jnp.bfloat16), w3_ref[...],
                preferred_element_type=jnp.float32)
    h = jnp.maximum(h + b3_ref[...], 0.0)

    # ---- Layer 4: (bm, 512) @ (512, 128); padded output columns are zero.
    out = jnp.dot(h.astype(jnp.bfloat16), w4_ref[...],
                  preferred_element_type=jnp.float32)
    o_ref[...] = (out + b4_ref[...]).astype(o_ref.dtype)


def prepare_params(params):
    """Zero-pad params to TPU-friendly shapes and cast MXU weights to bf16.

    Padding is exact zeros, so results are unchanged: padded hidden lanes are
    ReLU(0 + 0) = 0 and feed zero rows of the next weight; padded output
    columns are zero and sliced off in the wrapper.
    """
    w1, b1, w2, b2, w3, b3, w4, b4 = params
    hp = H_PAD - H_DIM
    op = OUT_PAD - OUT_DIM
    w1p = jnp.pad(w1, ((0, 0), (0, hp))).astype(jnp.float32)   # VPU layer: f32
    b1p = jnp.pad(b1, ((0, 0), (0, hp))).astype(jnp.float32)
    w2p = jnp.pad(w2, ((0, hp), (0, hp))).astype(jnp.bfloat16)
    b2p = jnp.pad(b2, ((0, 0), (0, hp))).astype(jnp.float32)
    w3p = jnp.pad(w3, ((0, hp), (0, hp))).astype(jnp.bfloat16)
    b3p = jnp.pad(b3, ((0, 0), (0, hp))).astype(jnp.float32)
    w4p = jnp.pad(w4, ((0, hp), (0, op))).astype(jnp.bfloat16)
    b4p = jnp.pad(b4, ((0, 0), (0, op))).astype(jnp.float32)
    return (w1p, b1p, w2p, b2p, w3p, b3p, w4p, b4p)


@functools.partial(jax.jit, static_argnames=("block_m",))
def generator_forward(z, padded_params, block_m=256):
    """z: (B, 2) f32 -> (B, 2) f32. `padded_params` comes from prepare_params()."""
    w1, b1, w2, b2, w3, b3, w4, b4 = padded_params
    B = z.shape[0]

    # Batch tile: large enough to fill MXU rows, but split so the grid keeps
    # >= 2 steps when the batch allows it (v7x megacore sharding).
    bm = min(block_m, _round_up(B, 8))
    if B >= 16 and _round_up(B, bm) // bm < 2:
        bm = _round_up(_round_up(B, 16) // 2, 8)

    Bp = _round_up(B, bm)
    if Bp != B:
        z = jnp.pad(z, ((0, Bp - B), (0, 0)))
    grid = (Bp // bm,)

    def rep(shape):
        # Weights/biases are replicated to every grid step (constant block 0).
        return pl.BlockSpec(shape, lambda i: (0, 0))

    flops = 2 * Bp * (IN_DIM * H_PAD + 2 * H_PAD * H_PAD + H_PAD * OUT_PAD)
    param_bytes = sum(int(p.size) * p.dtype.itemsize
                      for p in (w1, b1, w2, b2, w3, b3, w4, b4))
    bytes_accessed = int(Bp * IN_DIM * 4 + param_bytes + Bp * OUT_PAD * 4)

    out = pl.pallas_call(
        _generator_kernel,
        out_shape=jax.ShapeDtypeStruct((Bp, OUT_PAD), jnp.float32),
        grid_spec=pltpu.PrefetchScalarGridSpec(
            num_scalar_prefetch=0,
            grid=grid,
            in_specs=[
                pl.BlockSpec((bm, IN_DIM), lambda i: (i, 0)),    # z tile
                rep((IN_DIM, H_PAD)), rep((1, H_PAD)),           # layer 1
                rep((H_PAD, H_PAD)), rep((1, H_PAD)),            # layer 2
                rep((H_PAD, H_PAD)), rep((1, H_PAD)),            # layer 3
                rep((H_PAD, OUT_PAD)), rep((1, OUT_PAD)),        # layer 4
            ],
            out_specs=pl.BlockSpec((bm, OUT_PAD), lambda i: (i, 0)),
        ),
        compiler_params=pltpu.CompilerParams(
            dimension_semantics=("parallel",)),
        cost_estimate=pl.CostEstimate(
            flops=int(flops), transcendentals=0,
            bytes_accessed=bytes_accessed),
    )(z, w1, b1, w2, b2, w3, b3, w4, b4)

    return out[:B, :OUT_DIM]


def init_params(key):
    """Deterministic f32 parameter init matching the nn.Linear shapes."""
    dims = [(IN_DIM, H_DIM), (H_DIM, H_DIM), (H_DIM, H_DIM), (H_DIM, OUT_DIM)]
    params = []
    for i, (fan_in, fan_out) in enumerate(dims):
        kw, kb = jax.random.split(jax.random.fold_in(key, i))
        bound = 1.0 / jnp.sqrt(fan_in)  # PyTorch default uniform bound
        w = jax.random.uniform(kw, (fan_in, fan_out), jnp.float32, -bound, bound)
        b = jax.random.uniform(kb, (1, fan_out), jnp.float32, -bound, bound)
        params.extend([w, b])
    return tuple(params)


def generator_reference(z, params):
    """Plain-JAX f32 reference matching the PyTorch forward."""
    w1, b1, w2, b2, w3, b3, w4, b4 = params
    h = jnp.maximum(z @ w1 + b1, 0.0)
    h = jnp.maximum(h @ w2 + b2, 0.0)
    h = jnp.maximum(h @ w3 + b3, 0.0)
    return h @ w4 + b4


if __name__ == "__main__":
    key = jax.random.PRNGKey(0)
    kp, kz = jax.random.split(key)

    params = init_params(kp)          # logical f32 params (PyTorch shapes)
    padded = prepare_params(params)   # padded / bf16 params for the kernel

    B = 70                            # exercises batch padding + >=2 grid steps
    z = jax.random.normal(kz, (B, IN_DIM), jnp.float32)

    out = generator_forward(z, padded)
    out = jax.block_until_ready(out)

    ref = generator_reference(z, params)
    assert out.shape == (B, OUT_DIM)
    # bf16 MXU weights -> relaxed tolerance vs the pure-f32 reference.
    assert jnp.allclose(out, ref, atol=5e-2, rtol=5e-2), "mismatch vs reference"

    print("KERNEL_OK")
</pallas_src>

<mosaic_0001>
module attributes {stable_mosaic.version = 11 : i64} {
  func.func @_generator_kernel(%arg0: i32, %arg1: memref<40x2xf32, #tpu.memory_space<vmem>>, %arg2: memref<2x512xf32, #tpu.memory_space<vmem>>, %arg3: memref<1x512xf32, #tpu.memory_space<vmem>>, %arg4: memref<512x512xbf16, #tpu.memory_space<vmem>>, %arg5: memref<1x512xf32, #tpu.memory_space<vmem>>, %arg6: memref<512x512xbf16, #tpu.memory_space<vmem>>, %arg7: memref<1x512xf32, #tpu.memory_space<vmem>>, %arg8: memref<512x128xbf16, #tpu.memory_space<vmem>>, %arg9: memref<1x128xf32, #tpu.memory_space<vmem>>, %arg10: memref<40x128xf32, #tpu.memory_space<vmem>>) attributes {dimension_semantics = [#tpu.dimension_semantics<parallel>], iteration_bounds = array<i64: 2>, scalar_prefetch = 0 : i64, scratch_operands = 0 : i64, tpu.core_type = #tpu.core_type<tc>, window_params = [{transform_indices = @transform_0, window_bounds = array<i64: 40, 2>}, {pipeline_mode = #tpu.pipeline_mode<synchronous>, transform_indices = @transform_1, window_bounds = array<i64: 2, 512>}, {pipeline_mode = #tpu.pipeline_mode<synchronous>, transform_indices = @transform_2, window_bounds = array<i64: 1, 512>}, {pipeline_mode = #tpu.pipeline_mode<synchronous>, transform_indices = @transform_3, window_bounds = array<i64: 512, 512>}, {pipeline_mode = #tpu.pipeline_mode<synchronous>, transform_indices = @transform_4, window_bounds = array<i64: 1, 512>}, {pipeline_mode = #tpu.pipeline_mode<synchronous>, transform_indices = @transform_5, window_bounds = array<i64: 512, 512>}, {pipeline_mode = #tpu.pipeline_mode<synchronous>, transform_indices = @transform_6, window_bounds = array<i64: 1, 512>}, {pipeline_mode = #tpu.pipeline_mode<synchronous>, transform_indices = @transform_7, window_bounds = array<i64: 512, 128>}, {pipeline_mode = #tpu.pipeline_mode<synchronous>, transform_indices = @transform_8, window_bounds = array<i64: 1, 128>}, {transform_indices = @transform_9, window_bounds = array<i64: 40, 128>}]} {
    %c0 = arith.constant 0 : index
    %c0_0 = arith.constant 0 : index
    %0 = vector.load %arg1[%c0, %c0_0] : memref<40x2xf32, #tpu.memory_space<vmem>>, vector<40x2xf32>
    %c0_1 = arith.constant 0 : index
    %c0_2 = arith.constant 0 : index
    %1 = vector.load %arg2[%c0_1, %c0_2] : memref<2x512xf32, #tpu.memory_space<vmem>>, vector<2x512xf32>
    %2 = vector.extract_strided_slice %0 {offsets = [0, 0], sizes = [40, 1], strides = [1, 1]} : vector<40x2xf32> to vector<40x1xf32>
    %3 = vector.extract_strided_slice %1 {offsets = [0, 0], sizes = [1, 512], strides = [1, 1]} : vector<2x512xf32> to vector<1x512xf32>
    %4 = vector.broadcast %2 : vector<40x1xf32> to vector<40x512xf32>
    %5 = vector.broadcast %3 : vector<1x512xf32> to vector<40x512xf32>
    %6 = arith.mulf %4, %5 : vector<40x512xf32>
    %7 = vector.extract_strided_slice %0 {offsets = [0, 1], sizes = [40, 1], strides = [1, 1]} : vector<40x2xf32> to vector<40x1xf32>
    %8 = vector.extract_strided_slice %1 {offsets = [1, 0], sizes = [1, 512], strides = [1, 1]} : vector<2x512xf32> to vector<1x512xf32>
    %9 = vector.broadcast %7 : vector<40x1xf32> to vector<40x512xf32>
    %10 = vector.broadcast %8 : vector<1x512xf32> to vector<40x512xf32>
    %11 = arith.mulf %9, %10 : vector<40x512xf32>
    %12 = arith.addf %6, %11 : vector<40x512xf32>
    %c0_3 = arith.constant 0 : index
    %c0_4 = arith.constant 0 : index
    %13 = vector.load %arg3[%c0_3, %c0_4] : memref<1x512xf32, #tpu.memory_space<vmem>>, vector<1x512xf32>
    %14 = vector.broadcast %13 : vector<1x512xf32> to vector<40x512xf32>
    %15 = arith.addf %12, %14 : vector<40x512xf32>
    %cst = arith.constant 0.000000e+00 : f32
    %16 = vector.broadcast %cst : f32 to vector<40x512xf32>
    %17 = arith.maximumf %15, %16 : vector<40x512xf32>
    %18 = arith.truncf %17 : vector<40x512xf32> to vector<40x512xbf16>
    %c0_5 = arith.constant 0 : index
    %c0_6 = arith.constant 0 : index
    %19 = vector.load %arg4[%c0_5, %c0_6] : memref<512x512xbf16, #tpu.memory_space<vmem>>, vector<512x512xbf16>
    %cst_7 = arith.constant dense<0.000000e+00> : vector<40x512xf32>
    %20 = tpu.matmul %18, %19, %cst_7 {dimension_numbers = #tpu.dot_dimension_numbers<[1], [0], [0], [1], [0, 0, 1, 1], [], []>} : vector<40x512xbf16>, vector<512x512xbf16>, vector<40x512xf32> -> vector<40x512xf32>
    %c0_8 = arith.constant 0 : index
    %c0_9 = arith.constant 0 : index
    %21 = vector.load %arg5[%c0_8, %c0_9] : memref<1x512xf32, #tpu.memory_space<vmem>>, vector<1x512xf32>
    %22 = vector.broadcast %21 : vector<1x512xf32> to vector<40x512xf32>
    %23 = arith.addf %20, %22 : vector<40x512xf32>
    %cst_10 = arith.constant 0.000000e+00 : f32
    %24 = vector.broadcast %cst_10 : f32 to vector<40x512xf32>
    %25 = arith.maximumf %23, %24 : vector<40x512xf32>
    %26 = arith.truncf %25 : vector<40x512xf32> to vector<40x512xbf16>
    %c0_11 = arith.constant 0 : index
    %c0_12 = arith.constant 0 : index
    %27 = vector.load %arg6[%c0_11, %c0_12] : memref<512x512xbf16, #tpu.memory_space<vmem>>, vector<512x512xbf16>
    %cst_13 = arith.constant dense<0.000000e+00> : vector<40x512xf32>
    %28 = tpu.matmul %26, %27, %cst_13 {dimension_numbers = #tpu.dot_dimension_numbers<[1], [0], [0], [1], [0, 0, 1, 1], [], []>} : vector<40x512xbf16>, vector<512x512xbf16>, vector<40x512xf32> -> vector<40x512xf32>
    %c0_14 = arith.constant 0 : index
    %c0_15 = arith.constant 0 : index
    %29 = vector.load %arg7[%c0_14, %c0_15] : memref<1x512xf32, #tpu.memory_space<vmem>>, vector<1x512xf32>
    %30 = vector.broadcast %29 : vector<1x512xf32> to vector<40x512xf32>
    %31 = arith.addf %28, %30 : vector<40x512xf32>
    %cst_16 = arith.constant 0.000000e+00 : f32
    %32 = vector.broadcast %cst_16 : f32 to vector<40x512xf32>
    %33 = arith.maximumf %31, %32 : vector<40x512xf32>
    %34 = arith.truncf %33 : vector<40x512xf32> to vector<40x512xbf16>
    %c0_17 = arith.constant 0 : index
    %c0_18 = arith.constant 0 : index
    %35 = vector.load %arg8[%c0_17, %c0_18] : memref<512x128xbf16, #tpu.memory_space<vmem>>, vector<512x128xbf16>
    %cst_19 = arith.constant dense<0.000000e+00> : vector<40x128xf32>
    %36 = tpu.matmul %34, %35, %cst_19 {dimension_numbers = #tpu.dot_dimension_numbers<[1], [0], [0], [1], [0, 0, 1, 1], [], []>} : vector<40x512xbf16>, vector<512x128xbf16>, vector<40x128xf32> -> vector<40x128xf32>
    %c0_20 = arith.constant 0 : index
    %c0_21 = arith.constant 0 : index
    %37 = vector.load %arg9[%c0_20, %c0_21] : memref<1x128xf32, #tpu.memory_space<vmem>>, vector<1x128xf32>
    %38 = vector.broadcast %37 : vector<1x128xf32> to vector<40x128xf32>
    %39 = arith.addf %36, %38 : vector<40x128xf32>
    %c0_22 = arith.constant 0 : index
    %c0_23 = arith.constant 0 : index
    %40 = vector.load %arg10[%c0_22, %c0_23] : memref<40x128xf32, #tpu.memory_space<vmem>>, vector<40x128xf32>
    tpu.vector_store %arg10[%c0_22, %c0_23], %39 {strides = array<i32>} : memref<40x128xf32, #tpu.memory_space<vmem>>, vector<40x128xf32>,
    return
  }
  func.func @transform_0(%arg0: i32) -> (i32, i32) {
    %c0_i32 = arith.constant 0 : i32
    %c0_i32_0 = arith.constant 0 : i32
    return %arg0, %c0_i32 : i32, i32
  }
  func.func @transform_1(%arg0: i32) -> (i32, i32) {
    %c0_i32 = arith.constant 0 : i32
    %c0_i32_0 = arith.constant 0 : i32
    %c0_i32_1 = arith.constant 0 : i32
    return %c0_i32, %c0_i32_0 : i32, i32
  }
  func.func @transform_2(%arg0: i32) -> (i32, i32) {
    %c0_i32 = arith.constant 0 : i32
    %c0_i32_0 = arith.constant 0 : i32
    %c0_i32_1 = arith.constant 0 : i32
    return %c0_i32, %c0_i32_0 : i32, i32
  }
  func.func @transform_3(%arg0: i32) -> (i32, i32) {
    %c0_i32 = arith.constant 0 : i32
    %c0_i32_0 = arith.constant 0 : i32
    %c0_i32_1 = arith.constant 0 : i32
    return %c0_i32, %c0_i32_0 : i32, i32
  }
  func.func @transform_4(%arg0: i32) -> (i32, i32) {
    %c0_i32 = arith.constant 0 : i32
    %c0_i32_0 = arith.constant 0 : i32
    %c0_i32_1 = arith.constant 0 : i32
    return %c0_i32, %c0_i32_0 : i32, i32
  }
  func.func @transform_5(%arg0: i32) -> (i32, i32) {
    %c0_i32 = arith.constant 0 : i32
    %c0_i32_0 = arith.constant 0 : i32
    %c0_i32_1 = arith.constant 0 : i32
    return %c0_i32, %c0_i32_0 : i32, i32
  }
  func.func @transform_6(%arg0: i32) -> (i32, i32) {
    %c0_i32 = arith.constant 0 : i32
    %c0_i32_0 = arith.constant 0 : i32
    %c0_i32_1 = arith.constant 0 : i32
    return %c0_i32, %c0_i32_0 : i32, i32
  }
  func.func @transform_7(%arg0: i32) -> (i32, i32) {
    %c0_i32 = arith.constant 0 : i32
    %c0_i32_0 = arith.constant 0 : i32
    %c0_i32_1 = arith.constant 0 : i32
    return %c0_i32, %c0_i32_0 : i32, i32
  }
  func.func @transform_8(%arg0: i32) -> (i32, i32) {
    %c0_i32 = arith.constant 0 : i32
    %c0_i32_0 = arith.constant 0 : i32
    %c0_i32_1 = arith.constant 0 : i32
    return %c0_i32, %c0_i32_0 : i32, i32
  }
  func.func @transform_9(%arg0: i32) -> (i32, i32) {
    %c0_i32 = arith.constant 0 : i32
    %c0_i32_0 = arith.constant 0 : i32
    return %arg0, %c0_i32 : i32, i32
  }
}

</mosaic_0001>

<llo_original>
// kernel: generator_forward.1
$region0: #{generator_forward.1}
  #allocation0 [shape = 'u32[]', space=smem, size = 0x4, offset = 0x4, fixed_abs, tag = 'smem constant byte address 0x4 - core index']
  #allocation1 [shape = 'u32[72,128]{1,0:T(1,128)}', space=vmem, size = 0x9000, scoped, tag = 'internal scratch']
  %s0 = inlined_call_operand.vmem [shape: f32[80,2], index: 0, kind: input, shape index: {}]
  %s1 = inlined_call_operand.vmem [shape: f32[2,512], index: 1, kind: input, shape index: {}]
  %s2 = inlined_call_operand.vmem [shape: f32[1,512], index: 2, kind: input, shape index: {}]
  %s3 = inlined_call_operand.hbm [shape: bf16[512,512], index: 3, kind: input, shape index: {}]
  %s4 = inlined_call_operand.vmem [shape: f32[1,512], index: 4, kind: input, shape index: {}]
  %s5 = inlined_call_operand.hbm [shape: bf16[512,512], index: 5, kind: input, shape index: {}]
  %s6 = inlined_call_operand.vmem [shape: f32[1,512], index: 6, kind: input, shape index: {}]
  %s7 = inlined_call_operand.hbm [shape: bf16[512,128], index: 7, kind: input, shape index: {}]
  %s8 = inlined_call_operand.vmem [shape: f32[1,128], index: 8, kind: input, shape index: {}]
  %s9 = inlined_call_operand.vmem [shape: f32[80,128], index: 9, kind: output, shape index: {}]
  %s10 = sld [smem:[#allocation0]]
  $region81: #{generator_forward.1} parent=0
    _
  %s12 = ssub.s32 1, %s10
  %s13 = scalar_select 0, %s12, %s10
  $region1: #{generator_forward.1} parent=0
    #allocation2 [shape = 'u8[524288]{0}', space=vmem, size = 0x80000, scoped, tag = 'input window, operand 3, single buffered']
    #allocation3 [shape = 's32[2]{0}', space=sflag, size = 0x8, scoped, tag = 'scoped memory for generator_forward.1']
    #allocation4 [shape = 'u8[524288]{0}', space=vmem, size = 0x80000, scoped, tag = 'input window, operand 5, single buffered']
    #allocation5 [shape = 's32[1]{0}', space=sflag, size = 0x4, scoped, tag = 'scoped memory for generator_forward.1']
    #allocation6 [shape = 'u8[131072]{0}', space=vmem, size = 0x20000, scoped, tag = 'input window, operand 7, single buffered']
    %14 = vsyncpa [#allocation3], 0
    %15 = vsyncpa [#allocation5], 0
    loop: start=0, step=1, limit=4
    $region2: #{generator_forward.1} parent=1 // loop_pre_header
      _
    $region3: #{generator_forward.1} parent=1 // loop_header
      %s17 = sphi 0, %s21
      %p18 = scmp.ge.s32.totalorder %s17, 4
      %s27 = sphi 0, %s29
      %s30 = sphi 0, %s27
      %s31 = sphi 0, %s30
      %s47 = sphi 0, %s31
      %s51 = sphi 0, %s51
      %s53 = sphi 0, %s51
      %s54 = sphi 0, %s53
      %s68 = sphi 0, %s54
      %s72 = sphi 0, %s72
      %s74 = sphi 0, %s72
      %s75 = sphi 0, %s74
      %s89 = sphi 0, %s75
      %s93 = sphi 0, %s93
      %s95 = sphi 0, %s93
      %s96 = sphi 0, %s95
      %s110 = sphi 0, %s96
      %s114 = sphi 0, %s114
      %s116 = sphi 0, %s114
      %s117 = sphi 0, %s116
      %s131 = sphi 0, %s117
      %s135 = sphi 0, %s135
      %s137 = sphi 0, %s135
      %s138 = sphi 0, %s137
      %s152 = sphi 0, %s138
      %s156 = sphi 0, %s156
      %s158 = sphi 0, %s156
      %s159 = sphi 0, %s158
      %s173 = sphi 0, %s159
      %s177 = sphi 0, %s177
      %s179 = sphi 0, %s177
      %s180 = sphi 0, %s179
      %s194 = sphi 0, %s180
      %s198 = sphi 0, %s198
      %s200 = sphi 0, %s198
      %s201 = sphi 0, %s200
      %s215 = sphi 0, %s201
      %s221 = sphi 0, %s223
      %s224 = sphi 0, %s221
      %s225 = sphi 0, %s224
      %s241 = sphi 0, %s225
    $region4: #{generator_forward.1} parent=1 // loop_header_branch
      %20 = sbr.rel (%p18) target = $region8
    $region5: #{generator_forward.1} parent=1 // loop_body
      %s22 = ssub.s32 %s17, 1
      %s23 = ssub.s32 %s17, 2
      %s24 = sadd.s32 %s17, 1
      %s25 = ssub.s32 %s17, %s24
      %p26 = scmp.eq.s32.totalorder %s25, 0
      %s28 = sadd.s32 %s27, 1
      %s29 = scalar_select %p26, %s27, %s28
      %p32 = pneg %p26
      %p33 = scmp.eq.s32.totalorder %s17, 1
      %p34 = por %p32, %p33
      %p35 = scmp.ne.s32.totalorder %s27, %s30
      %p36 = scmp.eq.s32.totalorder %s17, 0
      %p37 = por %p35, %p36
      %p38 = scmp.ne.s32.totalorder %s27, %s30
      %p39 = scmp.eq.s32.totalorder %s22, 1
      %p40 = por %p38, %p39
      %p41 = scmp.ne.s32.totalorder %s30, %s31
      %p42 = scmp.eq.s32.totalorder %s22, 0
      %p43 = por %p41, %p42
      %p44 = scmp.ne.s32.totalorder %s30, %s31
      %p45 = scmp.eq.s32.totalorder %s23, 1
      %p46 = por %p44, %p45
      %p48 = scmp.ne.s32.totalorder %s31, %s47
      %p49 = scmp.eq.s32.totalorder %s23, 0
      %p50 = por %p48, %p49
      %s52 = sadd.s32 %s51, 1
      %p55 = scmp.eq.s32.totalorder %s17, 1
      %p56 = scmp.ne.s32.totalorder %s51, %s53
      %p57 = scmp.eq.s32.totalorder %s17, 0
      %p58 = por %p56, %p57
      %p59 = scmp.ne.s32.totalorder %s51, %s53
      %p60 = scmp.eq.s32.totalorder %s22, 1
      %p61 = por %p59, %p60
      %p62 = scmp.ne.s32.totalorder %s53, %s54
      %p63 = scmp.eq.s32.totalorder %s22, 0
      %p64 = por %p62, %p63
      %p65 = scmp.ne.s32.totalorder %s53, %s54
      %p66 = scmp.eq.s32.totalorder %s23, 1
      %p67 = por %p65, %p66
      %p69 = scmp.ne.s32.totalorder %s54, %s68
      %p70 = scmp.eq.s32.totalorder %s23, 0
      %p71 = por %p69, %p70
      %s73 = sadd.s32 %s72, 1
      %p76 = scmp.eq.s32.totalorder %s17, 1
      %p77 = scmp.ne.s32.totalorder %s72, %s74
      %p78 = scmp.eq.s32.totalorder %s17, 0
      %p79 = por %p77, %p78
      %p80 = scmp.ne.s32.totalorder %s72, %s74
      %p81 = scmp.eq.s32.totalorder %s22, 1
      %p82 = por %p80, %p81
      %p83 = scmp.ne.s32.totalorder %s74, %s75
      %p84 = scmp.eq.s32.totalorder %s22, 0
      %p85 = por %p83, %p84
      %p86 = scmp.ne.s32.totalorder %s74, %s75
      %p87 = scmp.eq.s32.totalorder %s23, 1
      %p88 = por %p86, %p87
      %p90 = scmp.ne.s32.totalorder %s75, %s89
      %p91 = scmp.eq.s32.totalorder %s23, 0
      %p92 = por %p90, %p91
      %s94 = sadd.s32 %s93, 1
      %p97 = scmp.eq.s32.totalorder %s17, 1
      %p98 = scmp.ne.s32.totalorder %s93, %s95
      %p99 = scmp.eq.s32.totalorder %s17, 0
      %p100 = por %p98, %p99
      %p101 = scmp.ne.s32.totalorder %s93, %s95
      %p102 = scmp.eq.s32.totalorder %s22, 1
      %p103 = por %p101, %p102
      %p104 = scmp.ne.s32.totalorder %s95, %s96
      %p105 = scmp.eq.s32.totalorder %s22, 0
      %p106 = por %p104, %p105
      %p107 = scmp.ne.s32.totalorder %s95, %s96
      %p108 = scmp.eq.s32.totalorder %s23, 1
      %p109 = por %p107, %p108
      %p111 = scmp.ne.s32.totalorder %s96, %s110
      %p112 = scmp.eq.s32.totalorder %s23, 0
      %p113 = por %p111, %p112
      %s115 = sadd.s32 %s114, 1
      %p118 = scmp.eq.s32.totalorder %s17, 1
      %p119 = scmp.ne.s32.totalorder %s114, %s116
      %p120 = scmp.eq.s32.totalorder %s17, 0
      %p121 = por %p119, %p120
      %p122 = scmp.ne.s32.totalorder %s114, %s116
      %p123 = scmp.eq.s32.totalorder %s22, 1
      %p124 = por %p122, %p123
      %p125 = scmp.ne.s32.totalorder %s116, %s117
      %p126 = scmp.eq.s32.totalorder %s22, 0
      %p127 = por %p125, %p126
      %p128 = scmp.ne.s32.totalorder %s116, %s117
      %p129 = scmp.eq.s32.totalorder %s23, 1
      %p130 = por %p128, %p129
      %p132 = scmp.ne.s32.totalorder %s117, %s131
      %p133 = scmp.eq.s32.totalorder %s23, 0
      %p134 = por %p132, %p133
      %s136 = sadd.s32 %s135, 1
      %p139 = scmp.eq.s32.totalorder %s17, 1
      %p140 = scmp.ne.s32.totalorder %s135, %s137
      %p141 = scmp.eq.s32.totalorder %s17, 0
      %p142 = por %p140, %p141
      %p143 = scmp.ne.s32.totalorder %s135, %s137
      %p144 = scmp.eq.s32.totalorder %s22, 1
      %p145 = por %p143, %p144
      %p146 = scmp.ne.s32.totalorder %s137, %s138
      %p147 = scmp.eq.s32.totalorder %s22, 0
      %p148 = por %p146, %p147
      %p149 = scmp.ne.s32.totalorder %s137, %s138
      %p150 = scmp.eq.s32.totalorder %s23, 1
      %p151 = por %p149, %p150
      %p153 = scmp.ne.s32.totalorder %s138, %s152
      %p154 = scmp.eq.s32.totalorder %s23, 0
      %p155 = por %p153, %p154
      %s157 = sadd.s32 %s156, 1
      %p160 = scmp.eq.s32.totalorder %s17, 1
      %p161 = scmp.ne.s32.totalorder %s156, %s158
      %p162 = scmp.eq.s32.totalorder %s17, 0
      %p163 = por %p161, %p162
      %p164 = scmp.ne.s32.totalorder %s156, %s158
      %p165 = scmp.eq.s32.totalorder %s22, 1
      %p166 = por %p164, %p165
      %p167 = scmp.ne.s32.totalorder %s158, %s159
      %p168 = scmp.eq.s32.totalorder %s22, 0
      %p169 = por %p167, %p168
      %p170 = scmp.ne.s32.totalorder %s158, %s159
      %p171 = scmp.eq.s32.totalorder %s23, 1
      %p172 = por %p170, %p171
      %p174 = scmp.ne.s32.totalorder %s159, %s173
      %p175 = scmp.eq.s32.totalorder %s23, 0
      %p176 = por %p174, %p175
      %s178 = sadd.s32 %s177, 1
      %p181 = scmp.eq.s32.totalorder %s17, 1
      %p182 = scmp.ne.s32.totalorder %s177, %s179
      %p183 = scmp.eq.s32.totalorder %s17, 0
      %p184 = por %p182, %p183
      %p185 = scmp.ne.s32.totalorder %s177, %s179
      %p186 = scmp.eq.s32.totalorder %s22, 1
      %p187 = por %p185, %p186
      %p188 = scmp.ne.s32.totalorder %s179, %s180
      %p189 = scmp.eq.s32.totalorder %s22, 0
      %p190 = por %p188, %p189
      %p191 = scmp.ne.s32.totalorder %s179, %s180
      %p192 = scmp.eq.s32.totalorder %s23, 1
      %p193 = por %p191, %p192
      %p195 = scmp.ne.s32.totalorder %s180, %s194
      %p196 = scmp.eq.s32.totalorder %s23, 0
      %p197 = por %p195, %p196
      %s199 = sadd.s32 %s198, 1
      %p202 = scmp.eq.s32.totalorder %s17, 1
      %p203 = scmp.ne.s32.totalorder %s198, %s200
      %p204 = scmp.eq.s32.totalorder %s17, 0
      %p205 = por %p203, %p204
      %p206 = scmp.ne.s32.totalorder %s198, %s200
      %p207 = scmp.eq.s32.totalorder %s22, 1
      %p208 = por %p206, %p207
      %p209 = scmp.ne.s32.totalorder %s200, %s201
      %p210 = scmp.eq.s32.totalorder %s22, 0
      %p211 = por %p209, %p210
      %p212 = scmp.ne.s32.totalorder %s200, %s201
      %p213 = scmp.eq.s32.totalorder %s23, 1
      %p214 = por %p212, %p213
      %p216 = scmp.ne.s32.totalorder %s201, %s215
      %p217 = scmp.eq.s32.totalorder %s23, 0
      %p218 = por %p216, %p217
      %s219 = ssub.s32 %s17, %s24
      %p220 = scmp.eq.s32.totalorder %s219, 0
      %s222 = sadd.s32 %s221, 1
      %s223 = scalar_select %p220, %s221, %s222
      %p226 = pneg %p220
      %p227 = scmp.eq.s32.totalorder %s17, 1
      %p228 = por %p226, %p227
      %p229 = scmp.ne.s32.totalorder %s221, %s224
      %p230 = scmp.eq.s32.totalorder %s17, 0
      %p231 = por %p229, %p230
      %p232 = scmp.ne.s32.totalorder %s221, %s224
      %p233 = scmp.eq.s32.totalorder %s22, 1
      %p234 = por %p232, %p233
      %p235 = scmp.ne.s32.totalorder %s224, %s225
      %p236 = scmp.eq.s32.totalorder %s22, 0
      %p237 = por %p235, %p236
      %p238 = scmp.ne.s32.totalorder %s224, %s225
      %p239 = scmp.eq.s32.totalorder %s23, 1
      %p240 = por %p238, %p239
      %p242 = scmp.ne.s32.totalorder %s225, %s241
      %p243 = scmp.eq.s32.totalorder %s23, 0
      %p244 = por %p242, %p243
      %p245 = scmp.le.s32.totalorder 1, %s17
      %p246 = scmp.lt.s32.totalorder %s17, 3
      %p247 = pnand %p245, %p246
      %p248 = pneg %p247
      // Predicated region
      $region9: #{generator_forward.1} parent=5 // pred_check
        _
      $region10: #{generator_forward.1} parent=5 // pred_check_branch
        %250 = sbr.rel (%p247) target = $region12
      $region11: #{generator_forward.1} parent=5 // pred_region
        %s251 = ssub.s32 %s17, 1
        // Predicated region
        $region13: #{generator_forward.1} parent=11 // pred_check
          %p252 = pneg %p64
        $region14: #{generator_forward.1} parent=11 // pred_check_branch
          %254 = sbr.rel (%p252) target = $region16
        $region15: #{generator_forward.1} parent=11 // pred_region
          _
        $region16: #{generator_forward.1} parent=11 // pred_fallthru
          _
        // Predicated region
        $region17: #{generator_forward.1} parent=11 // pred_check
          %p255 = pneg %p85
        $region18: #{generator_forward.1} parent=11 // pred_check_branch
          %257 = sbr.rel (%p255) target = $region20
        $region19: #{generator_forward.1} parent=11 // pred_region
          _
        $region20: #{generator_forward.1} parent=11 // pred_fallthru
          _
        // Predicated region
        $region21: #{generator_forward.1} parent=11 // pred_check
          %p258 = pneg %p106
        $region22: #{generator_forward.1} parent=11 // pred_check_branch
          %260 = sbr.rel (%p258) target = $region24
        $region23: #{generator_forward.1} parent=11 // pred_region
          %262 = vsyncadd [#allocation3], 0
          %s263 = sshll.u32 %s3, 4
          %s264 = int_to_ptr.hbm [resolvable:$true] %s263
          %s265 = sshll.u32 [#allocation2], 4
          %s266 = int_to_ptr.vmem [resolvable:$true] %s265
          %271 = dma.hbm_to_vmem [thread:$0]  %s264, 16384, %s266, [#allocation3], 256, 256, 16
        $region24: #{generator_forward.1} parent=11 // pred_fallthru
          _
        // Predicated region
        $region25: #{generator_forward.1} parent=11 // pred_check
          %p272 = pneg %p127
        $region26: #{generator_forward.1} parent=11 // pred_check_branch
          %274 = sbr.rel (%p272) target = $region28
        $region27: #{generator_forward.1} parent=11 // pred_region
          _
        $region28: #{generator_forward.1} parent=11 // pred_fallthru
          _
        // Predicated region
        $region29: #{generator_forward.1} parent=11 // pred_check
          %p275 = pneg %p148
        $region30: #{generator_forward.1} parent=11 // pred_check_branch
          %277 = sbr.rel (%p275) target = $region32
        $region31: #{generator_forward.1} parent=11 // pred_region
          %279 = vsyncadd [#allocation5], 0
          %s280 = sshll.u32 %s5, 4
          %s281 = int_to_ptr.hbm [resolvable:$true] %s280
          %s282 = sshll.u32 [#allocation4], 4
          %s283 = int_to_ptr.vmem [resolvable:$true] %s282
          %288 = dma.hbm_to_vmem [thread:$0]  %s281, 16384, %s283, [#allocation5], 256, 256, 16
        $region32: #{generator_forward.1} parent=11 // pred_fallthru
          _
        // Predicated region
        $region33: #{generator_forward.1} parent=11 // pred_check
          %p289 = pneg %p169
        $region34: #{generator_forward.1} parent=11 // pred_check_branch
          %291 = sbr.rel (%p289) target = $region36
        $region35: #{generator_forward.1} parent=11 // pred_region
          _
        $region36: #{generator_forward.1} parent=11 // pred_fallthru
          _
        // Predicated region
        $region37: #{generator_forward.1} parent=11 // pred_check
          %p292 = pneg %p190
        $region38: #{generator_forward.1} parent=11 // pred_check_branch
          %294 = sbr.rel (%p292) target = $region40
        $region39: #{generator_forward.1} parent=11 // pred_region
          %296 = vsyncadd [#allocation5], 0
          %s297 = sshll.u32 %s7, 4
          %s298 = int_to_ptr.hbm [resolvable:$true] %s297
          %s299 = sshll.u32 [#allocation6], 4
          %s300 = int_to_ptr.vmem [resolvable:$true] %s299
          %305 = dma.hbm_to_vmem [thread:$0]  %s298, 4096, %s300, [#allocation5], 64, 64, 4
        $region40: #{generator_forward.1} parent=11 // pred_fallthru
          _
        // Predicated region
        $region41: #{generator_forward.1} parent=11 // pred_check
          %p306 = pneg %p211
        $region42: #{generator_forward.1} parent=11 // pred_check_branch
          %308 = sbr.rel (%p306) target = $region44
        $region43: #{generator_forward.1} parent=11 // pred_region
          _
        $region44: #{generator_forward.1} parent=11 // pred_fallthru
          _
      $region12: #{generator_forward.1} parent=5 // pred_fallthru
        _
      %p309 = scmp.lt.s32.totalorder %s17, 2
      // Predicated region
      $region45: #{generator_forward.1} parent=5 // pred_check
        %p310 = pneg %p309
      $region46: #{generator_forward.1} parent=5 // pred_check_branch
        %312 = sbr.rel (%p310) target = $region48
      $region47: #{generator_forward.1} parent=5 // pred_region
        // Predicated region
        $region49: #{generator_forward.1} parent=47 // pred_check
          %p313 = pneg %p37
        $region50: #{generator_forward.1} parent=47 // pred_check_branch
          %315 = sbr.rel (%p313) target = $region52
        $region51: #{generator_forward.1} parent=47 // pred_region
          %s316 = smul.u32 5, %s17
          %p317 = scmp.lt.s32.totalorder %s316, 9
          %s318 = scalar_select %p317, %s316, 9
          %s319 = smul.addr %s318, 8
          %s320 = scalar_lea.vmem %s0, %s319
          %s321 = smul.u32 5, %s17
        $region52: #{generator_forward.1} parent=47 // pred_fallthru
          _
      $region48: #{generator_forward.1} parent=5 // pred_fallthru
        _
      %p322 = scmp.le.s32.totalorder 1, %s17
      %p323 = scmp.lt.s32.totalorder %s17, 3
      %p324 = pnand %p322, %p323
      %p325 = pneg %p324
      // Predicated region
      $region53: #{generator_forward.1} parent=5 // pred_check
        _
      $region54: #{generator_forward.1} parent=5 // pred_check_branch
        %327 = sbr.rel (%p324) target = $region56
      $region55: #{generator_forward.1} parent=5 // pred_region
        %s328 = ssub.s32 %s17, 1
        // Predicated region
        $region57: #{generator_forward.1} parent=55 // pred_check
          %p329 = pneg %p106
        $region58: #{generator_forward.1} parent=55 // pred_check_branch
          %331 = sbr.rel (%p329) target = $region60
        $region59: #{generator_forward.1} parent=55 // pred_region
          %333 = dma.done [#allocation3], 16384
        $region60: #{generator_forward.1} parent=55 // pred_fallthru
          _
        // Predicated region
        $region61: #{generator_forward.1} parent=55 // pred_check
          %p334 = pneg %p148
        $region62: #{generator_forward.1} parent=55 // pred_check_branch
          %336 = sbr.rel (%p334) target = $region64
        $region63: #{generator_forward.1} parent=55 // pred_region
          %338 = dma.done [#allocation5], 16384
        $region64: #{generator_forward.1} parent=55 // pred_fallthru
          _
        // Predicated region
        $region65: #{generator_forward.1} parent=55 // pred_check
          %p339 = pneg %p190
        $region66: #{generator_forward.1} parent=55 // pred_check_branch
          %341 = sbr.rel (%p339) target = $region68
        $region67: #{generator_forward.1} parent=55 // pred_region
          %343 = dma.done [#allocation5], 4096
        $region68: #{generator_forward.1} parent=55 // pred_fallthru
          _
        %s344 = smul.u32 5, %s22
        %p345 = scmp.lt.s32.totalorder %s344, 9
        %s346 = scalar_select %p345, %s344, 9
        %s347 = smul.addr %s346, 8
        %s348 = scalar_lea.vmem %s0, %s347
        %p349 = pneg %p43
        %p350 = pneg %p40
        %p351 = pneg %p64
        %p352 = pneg %p61
        %p353 = pneg %p85
        %p354 = pneg %p82
        %p355 = pneg %p106
        %p356 = pneg %p103
        %p357 = pneg %p127
        %p358 = pneg %p124
        %p359 = pneg %p148
        %p360 = pneg %p145
        %p361 = pneg %p169
        %p362 = pneg %p166
        %p363 = pneg %p190
        %p364 = pneg %p187
        %p365 = pneg %p211
        %p366 = pneg %p208
        %p367 = pneg %p237
        %p368 = pneg %p234
        %s369 = smul.u32 5, %s22
        %p370 = scmp.lt.s32.totalorder %s369, 9
        %s371 = scalar_select %p370, %s369, 9
        %s372 = smul.addr %s371, 8
        %s373 = scalar_lea.vmem %s9, %s372
        %s374 = smul.u32 5, %s22
        %p375 = scmp.lt.s32.totalorder %s374, 9
        %s376 = scalar_select %p375, %s374, 9
        %s377 = smul.addr %s376, 8
        %s378 = scalar_lea.vmem %s0, %s377
        %s379 = smul.u32 5, %s22
        %s380 = smul.u32 5, %s22
        %p381 = scmp.lt.s32.totalorder %s380, 9
        %s382 = scalar_select %p381, %s380, 9
        %s383 = smul.addr %s382, 8
        %s384 = scalar_lea.vmem %s9, %s383
        %s385 = smul.u32 5, %s22
        %v386 = vld [vmem:[%s378] sm:$0xff]
        %v387 = vld [vmem:[%s378 + $0x8] sm:$0xff]
        %v388 = vld [vmem:[%s378 + $0x10] sm:$0xff]
        %v389 = vld [vmem:[%s378 + $0x18] sm:$0xff]
        %v390 = vld [vmem:[%s378 + $0x20] sm:$0xff]
        %v391 = vld [vmem:[%s1] sm:$0xff]
        %393 = vset.pattern.permute.xlu0 0
        %394 = vperm.xlu0 %393, %v386
        %v395 = vpop.permute.xlu0 %394
        %398 = vset.pattern.permute.xlu0 0
        %399 = vperm.xlu0 %398, %v387
        %v400 = vpop.permute.xlu0 %399
        %403 = vset.pattern.permute.xlu0 0
        %404 = vperm.xlu0 %403, %v388
        %v405 = vpop.permute.xlu0 %404
        %408 = vset.pattern.permute.xlu0 0
        %409 = vperm.xlu0 %408, %v389
        %v410 = vpop.permute.xlu0 %409
        %413 = vset.pattern.permute.xlu0 0
        %414 = vperm.xlu0 %413, %v390
        %v415 = vpop.permute.xlu0 %414
        %v418 = vperm.slane %v391, 0
        %v419 = vperm.slane %v391, 2
        %v420 = vperm.slane %v391, 4
        %v421 = vperm.slane %v391, 6
        %v426 = vperm.slane %v418, 0
        %v427 = vperm.slane %v419, 0
        %v428 = vperm.slane %v420, 0
        %v429 = vperm.slane %v421, 0
        %v430 = vmul.f32 %v395, %v426
        %v431 = vmul.f32 %v395, %v427
        %v432 = vmul.f32 %v395, %v428
        %v433 = vmul.f32 %v395, %v429
        %v434 = vmul.f32 %v400, %v426
        %v435 = vmul.f32 %v400, %v427
        %v436 = vmul.f32 %v400, %v428
        %v437 = vmul.f32 %v400, %v429
        %v438 = vmul.f32 %v405, %v426
        %v439 = vmul.f32 %v405, %v427
        %v440 = vmul.f32 %v405, %v428
        %v441 = vmul.f32 %v405, %v429
        %v442 = vmul.f32 %v410, %v426
        %v443 = vmul.f32 %v410, %v427
        %v444 = vmul.f32 %v410, %v428
        %v445 = vmul.f32 %v410, %v429
        %v446 = vmul.f32 %v415, %v426
        %v447 = vmul.f32 %v415, %v427
        %v448 = vmul.f32 %v415, %v428
        %v449 = vmul.f32 %v415, %v429
        %450 = vset.pattern.permute.xlu0 1
        %451 = vperm.xlu0 %450, %v386
        %v452 = vpop.permute.xlu0 %451
        %454 = vset.pattern.permute.xlu0 1
        %455 = vperm.xlu0 %454, %v387
        %v456 = vpop.permute.xlu0 %455
        %458 = vset.pattern.permute.xlu0 1
        %459 = vperm.xlu0 %458, %v388
        %v460 = vpop.permute.xlu0 %459
        %462 = vset.pattern.permute.xlu0 1
        %463 = vperm.xlu0 %462, %v389
        %v464 = vpop.permute.xlu0 %463
        %466 = vset.pattern.permute.xlu0 1
        %467 = vperm.xlu0 %466, %v390
        %v468 = vpop.permute.xlu0 %467
        %v470 = vperm.slane %v391, 1
        %v471 = vperm.slane %v391, 3
        %v472 = vperm.slane %v391, 5
        %v473 = vperm.slane %v391, 7
        %v478 = vperm.slane %v470, 1
        %v479 = vperm.slane %v471, 1
        %v480 = vperm.slane %v472, 1
        %v481 = vperm.slane %v473, 1
        %v482 = vmul.f32 %v452, %v478
        %v483 = vmul.f32 %v452, %v479
        %v484 = vmul.f32 %v452, %v480
        %v485 = vmul.f32 %v452, %v481
        %v486 = vmul.f32 %v456, %v478
        %v487 = vmul.f32 %v456, %v479
        %v488 = vmul.f32 %v456, %v480
        %v489 = vmul.f32 %v456, %v481
        %v490 = vmul.f32 %v460, %v478
        %v491 = vmul.f32 %v460, %v479
        %v492 = vmul.f32 %v460, %v480
        %v493 = vmul.f32 %v460, %v481
        %v494 = vmul.f32 %v464, %v478
        %v495 = vmul.f32 %v464, %v479
        %v496 = vmul.f32 %v464, %v480
        %v497 = vmul.f32 %v464, %v481
        %v498 = vmul.f32 %v468, %v478
        %v499 = vmul.f32 %v468, %v479
        %v500 = vmul.f32 %v468, %v480
        %v501 = vmul.f32 %v468, %v481
        %v502 = vadd.f32 %v430, %v482
        %v503 = vadd.f32 %v431, %v483
        %v504 = vadd.f32 %v432, %v484
        %v505 = vadd.f32 %v433, %v485
        %v506 = vadd.f32 %v434, %v486
        %v507 = vadd.f32 %v435, %v487
        %v508 = vadd.f32 %v436, %v488
        %v509 = vadd.f32 %v437, %v489
        %v510 = vadd.f32 %v438, %v490
        %v511 = vadd.f32 %v439, %v491
        %v512 = vadd.f32 %v440, %v492
        %v513 = vadd.f32 %v441, %v493
        %v514 = vadd.f32 %v442, %v494
        %v515 = vadd.f32 %v443, %v495
        %v516 = vadd.f32 %v444, %v496
        %v517 = vadd.f32 %v445, %v497
        %v518 = vadd.f32 %v446, %v498
        %v519 = vadd.f32 %v447, %v499
        %v520 = vadd.f32 %v448, %v500
        %v521 = vadd.f32 %v449, %v501
        %v522 = vld [vmem:[%s2] sm:$0xf]
        %v524 = vperm.slane %v522, 0
        %v525 = vperm.slane %v522, 1
        %v526 = vperm.slane %v522, 2
        %v527 = vperm.slane %v522, 3
        %v532 = vadd.f32 %v502, %v524
        %v533 = vadd.f32 %v503, %v525
        %v534 = vadd.f32 %v504, %v526
        %v535 = vadd.f32 %v505, %v527
        %v536 = vadd.f32 %v506, %v524
        %v537 = vadd.f32 %v507, %v525
        %v538 = vadd.f32 %v508, %v526
        %v539 = vadd.f32 %v509, %v527
        %v540 = vadd.f32 %v510, %v524
        %v541 = vadd.f32 %v511, %v525
        %v542 = vadd.f32 %v512, %v526
        %v543 = vadd.f32 %v513, %v527
        %v544 = vadd.f32 %v514, %v524
        %v545 = vadd.f32 %v515, %v525
        %v546 = vadd.f32 %v516, %v526
        %v547 = vadd.f32 %v517, %v527
        %v548 = vadd.f32 %v518, %v524
        %v549 = vadd.f32 %v519, %v525
        %v550 = vadd.f32 %v520, %v526
        %v551 = vadd.f32 %v521, %v527
        %v552 = vmax.f32 %v532, 0.0
        %v553 = vmax.f32 %v533, 0.0
        %v554 = vmax.f32 %v534, 0.0
        %v555 = vmax.f32 %v535, 0.0
        %v556 = vmax.f32 %v536, 0.0
        %v557 = vmax.f32 %v537, 0.0
        %v558 = vmax.f32 %v538, 0.0
        %v559 = vmax.f32 %v539, 0.0
        %v560 = vmax.f32 %v540, 0.0
        %v561 = vmax.f32 %v541, 0.0
        %v562 = vmax.f32 %v542, 0.0
        %v563 = vmax.f32 %v543, 0.0
        %v564 = vmax.f32 %v544, 0.0
        %v565 = vmax.f32 %v545, 0.0
        %v566 = vmax.f32 %v546, 0.0
        %v567 = vmax.f32 %v547, 0.0
        %v568 = vmax.f32 %v548, 0.0
        %v569 = vmax.f32 %v549, 0.0
        %v570 = vmax.f32 %v550, 0.0
        %v571 = vmax.f32 %v551, 0.0
        %v572 = vpack.c.bf16 %v556, %v552
        %v573 = vpack.c.bf16 %v557, %v553
        %v574 = vpack.c.bf16 %v558, %v554
        %v575 = vpack.c.bf16 %v559, %v555
        %v576 = vpack.c.bf16 %v564, %v560
        %v577 = vpack.c.bf16 %v565, %v561
        %v578 = vpack.c.bf16 %v566, %v562
        %v579 = vpack.c.bf16 %v567, %v563
        %v580 = vpack.c.bf16 %v568, %v568
        %v581 = vpack.c.bf16 %v569, %v569
        %v582 = vpack.c.bf16 %v570, %v570
        %v583 = vpack.c.bf16 %v571, %v571
        %v584 = vld [vmem:[#allocation2] sm:$0xff]
        %v585 = vld [vmem:[#allocation2 + $0x8] sm:$0xff]
        %v586 = vld [vmem:[#allocation2 + $0x10] sm:$0xff]
        %v587 = vld [vmem:[#allocation2 + $0x18] sm:$0xff]
        %v588 = vld [vmem:[#allocation2 + $0x20] sm:$0xff]
        %v589 = vld [vmem:[#allocation2 + $0x28] sm:$0xff]
        %v590 = vld [vmem:[#allocation2 + $0x30] sm:$0xff]
        %v591 = vld [vmem:[#allocation2 + $0x38] sm:$0xff]
        %v592 = vld [vmem:[#allocation2 + $0x40] sm:$0xff]
        %v593 = vld [vmem:[#allocation2 + $0x48] sm:$0xff]
        %v594 = vld [vmem:[#allocation2 + $0x50] sm:$0xff]
        %v595 = vld [vmem:[#allocation2 + $0x58] sm:$0xff]
        %v596 = vld [vmem:[#allocation2 + $0x60] sm:$0xff]
        %v597 = vld [vmem:[#allocation2 + $0x68] sm:$0xff]
        %v598 = vld [vmem:[#allocation2 + $0x70] sm:$0xff]
        %v599 = vld [vmem:[#allocation2 + $0x78] sm:$0xff]
        %v600 = vld [vmem:[#allocation2 + $0x80] sm:$0xff]
        %v601 = vld [vmem:[#allocation2 + $0x88] sm:$0xff]
        %v602 = vld [vmem:[#allocation2 + $0x90] sm:$0xff]
        %v603 = vld [vmem:[#allocation2 + $0x98] sm:$0xff]
        %v604 = vld [vmem:[#allocation2 + $0xa0] sm:$0xff]
        %v605 = vld [vmem:[#allocation2 + $0xa8] sm:$0xff]
        %v606 = vld [vmem:[#allocation2 + $0xb0] sm:$0xff]
        %v607 = vld [vmem:[#allocation2 + $0xb8] sm:$0xff]
        %v608 = vld [vmem:[#allocation2 + $0xc0] sm:$0xff]
        %v609 = vld [vmem:[#allocation2 + $0xc8] sm:$0xff]
        %v610 = vld [vmem:[#allocation2 + $0xd0] sm:$0xff]
        %v611 = vld [vmem:[#allocation2 + $0xd8] sm:$0xff]
        %v612 = vld [vmem:[#allocation2 + $0xe0] sm:$0xff]
        %v613 = vld [vmem:[#allocation2 + $0xe8] sm:$0xff]
        %v614 = vld [vmem:[#allocation2 + $0xf0] sm:$0xff]
        %v615 = vld [vmem:[#allocation2 + $0xf8] sm:$0xff]
        %v616 = vld [vmem:[#allocation2 + $0x100] sm:$0xff]
        %v617 = vld [vmem:[#allocation2 + $0x108] sm:$0xff]
        %v618 = vld [vmem:[#allocation2 + $0x110] sm:$0xff]
        %v619 = vld [vmem:[#allocation2 + $0x118] sm:$0xff]
        %v620 = vld [vmem:[#allocation2 + $0x120] sm:$0xff]
        %v621 = vld [vmem:[#allocation2 + $0x128] sm:$0xff]
        %v622 = vld [vmem:[#allocation2 + $0x130] sm:$0xff]
        %v623 = vld [vmem:[#allocation2 + $0x138] sm:$0xff]
        %v624 = vld [vmem:[#allocation2 + $0x140] sm:$0xff]
        %v625 = vld [vmem:[#allocation2 + $0x148] sm:$0xff]
        %v626 = vld [vmem:[#allocation2 + $0x150] sm:$0xff]
        %v627 = vld [vmem:[#allocation2 + $0x158] sm:$0xff]
        %v628 = vld [vmem:[#allocation2 + $0x160] sm:$0xff]
        %v629 = vld [vmem:[#allocation2 + $0x168] sm:$0xff]
        %v630 = vld [vmem:[#allocation2 + $0x170] sm:$0xff]
        %v631 = vld [vmem:[#allocation2 + $0x178] sm:$0xff]
        %v632 = vld [vmem:[#allocation2 + $0x180] sm:$0xff]
        %v633 = vld [vmem:[#allocation2 + $0x188] sm:$0xff]
        %v634 = vld [vmem:[#allocation2 + $0x190] sm:$0xff]
        %v635 = vld [vmem:[#allocation2 + $0x198] sm:$0xff]
        %v636 = vld [vmem:[#allocation2 + $0x1a0] sm:$0xff]
        %v637 = vld [vmem:[#allocation2 + $0x1a8] sm:$0xff]
        %v638 = vld [vmem:[#allocation2 + $0x1b0] sm:$0xff]
        %v639 = vld [vmem:[#allocation2 + $0x1b8] sm:$0xff]
        %v640 = vld [vmem:[#allocation2 + $0x1c0] sm:$0xff]
        %v641 = vld [vmem:[#allocation2 + $0x1c8] sm:$0xff]
        %v642 = vld [vmem:[#allocation2 + $0x1d0] sm:$0xff]
        %v643 = vld [vmem:[#allocation2 + $0x1d8] sm:$0xff]
        %v644 = vld [vmem:[#allocation2 + $0x1e0] sm:$0xff]
        %v645 = vld [vmem:[#allocation2 + $0x1e8] sm:$0xff]
        %v646 = vld [vmem:[#allocation2 + $0x1f0] sm:$0xff]
        %v647 = vld [vmem:[#allocation2 + $0x1f8] sm:$0xff]
        %v648 = vld [vmem:[#allocation2 + $0x200] sm:$0xff]
        %v649 = vld [vmem:[#allocation2 + $0x208] sm:$0xff]
        %v650 = vld [vmem:[#allocation2 + $0x210] sm:$0xff]
        %v651 = vld [vmem:[#allocation2 + $0x218] sm:$0xff]
        %v652 = vld [vmem:[#allocation2 + $0x220] sm:$0xff]
        %v653 = vld [vmem:[#allocation2 + $0x228] sm:$0xff]
        %v654 = vld [vmem:[#allocation2 + $0x230] sm:$0xff]
        %v655 = vld [vmem:[#allocation2 + $0x238] sm:$0xff]
        %v656 = vld [vmem:[#allocation2 + $0x240] sm:$0xff]
        %v657 = vld [vmem:[#allocation2 + $0x248] sm:$0xff]
        %v658 = vld [vmem:[#allocation2 + $0x250] sm:$0xff]
        %v659 = vld [vmem:[#allocation2 + $0x258] sm:$0xff]
        %v660 = vld [vmem:[#allocation2 + $0x260] sm:$0xff]
        %v661 = vld [vmem:[#allocation2 + $0x268] sm:$0xff]
        %v662 = vld [vmem:[#allocation2 + $0x270] sm:$0xff]
        %v663 = vld [vmem:[#allocation2 + $0x278] sm:$0xff]
        %v664 = vld [vmem:[#allocation2 + $0x280] sm:$0xff]
        %v665 = vld [vmem:[#allocation2 + $0x288] sm:$0xff]
        %v666 = vld [vmem:[#allocation2 + $0x290] sm:$0xff]
        %v667 = vld [vmem:[#allocation2 + $0x298] sm:$0xff]
        %v668 = vld [vmem:[#allocation2 + $0x2a0] sm:$0xff]
        %v669 = vld [vmem:[#allocation2 + $0x2a8] sm:$0xff]
        %v670 = vld [vmem:[#allocation2 + $0x2b0] sm:$0xff]
        %v671 = vld [vmem:[#allocation2 + $0x2b8] sm:$0xff]
        %v672 = vld [vmem:[#allocation2 + $0x2c0] sm:$0xff]
        %v673 = vld [vmem:[#allocation2 + $0x2c8] sm:$0xff]
        %v674 = vld [vmem:[#allocation2 + $0x2d0] sm:$0xff]
        %v675 = vld [vmem:[#allocation2 + $0x2d8] sm:$0xff]
        %v676 = vld [vmem:[#allocation2 + $0x2e0] sm:$0xff]
        %v677 = vld [vmem:[#allocation2 + $0x2e8] sm:$0xff]
        %v678 = vld [vmem:[#allocation2 + $0x2f0] sm:$0xff]
        %v679 = vld [vmem:[#allocation2 + $0x2f8] sm:$0xff]
        %v680 = vld [vmem:[#allocation2 + $0x300] sm:$0xff]
        %v681 = vld [vmem:[#allocation2 + $0x308] sm:$0xff]
        %v682 = vld [vmem:[#allocation2 + $0x310] sm:$0xff]
        %v683 = vld [vmem:[#allocation2 + $0x318] sm:$0xff]
        %v684 = vld [vmem:[#allocation2 + $0x320] sm:$0xff]
        %v685 = vld [vmem:[#allocation2 + $0x328] sm:$0xff]
        %v686 = vld [vmem:[#allocation2 + $0x330] sm:$0xff]
        %v687 = vld [vmem:[#allocation2 + $0x338] sm:$0xff]
        %v688 = vld [vmem:[#allocation2 + $0x340] sm:$0xff]
        %v689 = vld [vmem:[#allocation2 + $0x348] sm:$0xff]
        %v690 = vld [vmem:[#allocation2 + $0x350] sm:$0xff]
        %v691 = vld [vmem:[#allocation2 + $0x358] sm:$0xff]
        %v692 = vld [vmem:[#allocation2 + $0x360] sm:$0xff]
        %v693 = vld [vmem:[#allocation2 + $0x368] sm:$0xff]
        %v694 = vld [vmem:[#allocation2 + $0x370] sm:$0xff]
        %v695 = vld [vmem:[#allocation2 + $0x378] sm:$0xff]
        %v696 = vld [vmem:[#allocation2 + $0x380] sm:$0xff]
        %v697 = vld [vmem:[#allocation2 + $0x388] sm:$0xff]
        %v698 = vld [vmem:[#allocation2 + $0x390] sm:$0xff]
        %v699 = vld [vmem:[#allocation2 + $0x398] sm:$0xff]
        %v700 = vld [vmem:[#allocation2 + $0x3a0] sm:$0xff]
        %v701 = vld [vmem:[#allocation2 + $0x3a8] sm:$0xff]
        %v702 = vld [vmem:[#allocation2 + $0x3b0] sm:$0xff]
        %v703 = vld [vmem:[#allocation2 + $0x3b8] sm:$0xff]
        %v704 = vld [vmem:[#allocation2 + $0x3c0] sm:$0xff]
        %v705 = vld [vmem:[#allocation2 + $0x3c8] sm:$0xff]
        %v706 = vld [vmem:[#allocation2 + $0x3d0] sm:$0xff]
        %v707 = vld [vmem:[#allocation2 + $0x3d8] sm:$0xff]
        %v708 = vld [vmem:[#allocation2 + $0x3e0] sm:$0xff]
        %v709 = vld [vmem:[#allocation2 + $0x3e8] sm:$0xff]
        %v710 = vld [vmem:[#allocation2 + $0x3f0] sm:$0xff]
        %v711 = vld [vmem:[#allocation2 + $0x3f8] sm:$0xff]
        %v712 = vld [vmem:[%s4] sm:$0xf]
        %v714 = vperm.slane %v712, 0
        %v715 = vperm.slane %v712, 1
        %v716 = vperm.slane %v712, 2
        %v717 = vperm.slane %v712, 3
        %v850 = vunpack.c.l.b16 %v584
        %v851 = vunpack.c.h.b16 %v584
        %v852 = vunpack.c.l.b16 %v585
        %v853 = vunpack.c.h.b16 %v585
        %v854 = vunpack.c.l.b16 %v586
        %v855 = vunpack.c.h.b16 %v586
        %v856 = vunpack.c.l.b16 %v587
        %v857 = vunpack.c.h.b16 %v587
        %v858 = vunpack.c.l.b16 %v588
        %v859 = vunpack.c.h.b16 %v588
        %v860 = vunpack.c.l.b16 %v589
        %v861 = vunpack.c.h.b16 %v589
        %v862 = vunpack.c.l.b16 %v590
        %v863 = vunpack.c.h.b16 %v590
        %v864 = vunpack.c.l.b16 %v591
        %v865 = vunpack.c.h.b16 %v591
        %v866 = vunpack.c.l.b16 %v592
        %v867 = vunpack.c.h.b16 %v592
        %v868 = vunpack.c.l.b16 %v593
        %v869 = vunpack.c.h.b16 %v593
        %v870 = vunpack.c.l.b16 %v594
        %v871 = vunpack.c.h.b16 %v594
        %v872 = vunpack.c.l.b16 %v595
        %v873 = vunpack.c.h.b16 %v595
        %v874 = vunpack.c.l.b16 %v596
        %v875 = vunpack.c.h.b16 %v596
        %v876 = vunpack.c.l.b16 %v597
        %v877 = vunpack.c.h.b16 %v597
        %v878 = vunpack.c.l.b16 %v598
        %v879 = vunpack.c.h.b16 %v598
        %v880 = vunpack.c.l.b16 %v599
        %v881 = vunpack.c.h.b16 %v599
        %v882 = vunpack.c.l.b16 %v600
        %v883 = vunpack.c.h.b16 %v600
        %v884 = vunpack.c.l.b16 %v601
        %v885 = vunpack.c.h.b16 %v601
        %v886 = vunpack.c.l.b16 %v602
        %v887 = vunpack.c.h.b16 %v602
        %v888 = vunpack.c.l.b16 %v603
        %v889 = vunpack.c.h.b16 %v603
        %v890 = vunpack.c.l.b16 %v604
        %v891 = vunpack.c.h.b16 %v604
        %v892 = vunpack.c.l.b16 %v605
        %v893 = vunpack.c.h.b16 %v605
        %v894 = vunpack.c.l.b16 %v606
        %v895 = vunpack.c.h.b16 %v606
        %v896 = vunpack.c.l.b16 %v607
        %v897 = vunpack.c.h.b16 %v607
        %v898 = vunpack.c.l.b16 %v608
        %v899 = vunpack.c.h.b16 %v608
        %v900 = vunpack.c.l.b16 %v609
        %v901 = vunpack.c.h.b16 %v609
        %v902 = vunpack.c.l.b16 %v610
        %v903 = vunpack.c.h.b16 %v610
        %v904 = vunpack.c.l.b16 %v611
        %v905 = vunpack.c.h.b16 %v611
        %v906 = vunpack.c.l.b16 %v612
        %v907 = vunpack.c.h.b16 %v612
        %v908 = vunpack.c.l.b16 %v613
        %v909 = vunpack.c.h.b16 %v613
        %v910 = vunpack.c.l.b16 %v614
        %v911 = vunpack.c.h.b16 %v614
        %v912 = vunpack.c.l.b16 %v615
        %v913 = vunpack.c.h.b16 %v615
        %v914 = vunpack.c.l.b16 %v616
        %v915 = vunpack.c.h.b16 %v616
        %v916 = vunpack.c.l.b16 %v617
        %v917 = vunpack.c.h.b16 %v617
        %v918 = vunpack.c.l.b16 %v618
        %v919 = vunpack.c.h.b16 %v618
        %v920 = vunpack.c.l.b16 %v619
        %v921 = vunpack.c.h.b16 %v619
        %v922 = vunpack.c.l.b16 %v620
        %v923 = vunpack.c.h.b16 %v620
        %v924 = vunpack.c.l.b16 %v621
        %v925 = vunpack.c.h.b16 %v621
        %v926 = vunpack.c.l.b16 %v622
        %v927 = vunpack.c.h.b16 %v622
        %v928 = vunpack.c.l.b16 %v623
        %v929 = vunpack.c.h.b16 %v623
        %v930 = vunpack.c.l.b16 %v624
        %v931 = vunpack.c.h.b16 %v624
        %v932 = vunpack.c.l.b16 %v625
        %v933 = vunpack.c.h.b16 %v625
        %v934 = vunpack.c.l.b16 %v626
        %v935 = vunpack.c.h.b16 %v626
        %v936 = vunpack.c.l.b16 %v627
        %v937 = vunpack.c.h.b16 %v627
        %v938 = vunpack.c.l.b16 %v628
        %v939 = vunpack.c.h.b16 %v628
        %v940 = vunpack.c.l.b16 %v629
        %v941 = vunpack.c.h.b16 %v629
        %v942 = vunpack.c.l.b16 %v630
        %v943 = vunpack.c.h.b16 %v630
        %v944 = vunpack.c.l.b16 %v631
        %v945 = vunpack.c.h.b16 %v631
        %v946 = vunpack.c.l.b16 %v632
        %v947 = vunpack.c.h.b16 %v632
        %v948 = vunpack.c.l.b16 %v633
        %v949 = vunpack.c.h.b16 %v633
        %v950 = vunpack.c.l.b16 %v634
        %v951 = vunpack.c.h.b16 %v634
        %v952 = vunpack.c.l.b16 %v635
        %v953 = vunpack.c.h.b16 %v635
        %v954 = vunpack.c.l.b16 %v636
        %v955 = vunpack.c.h.b16 %v636
        %v956 = vunpack.c.l.b16 %v637
        %v957 = vunpack.c.h.b16 %v637
        %v958 = vunpack.c.l.b16 %v638
        %v959 = vunpack.c.h.b16 %v638
        %v960 = vunpack.c.l.b16 %v639
        %v961 = vunpack.c.h.b16 %v639
        %v962 = vunpack.c.l.b16 %v640
        %v963 = vunpack.c.h.b16 %v640
        %v964 = vunpack.c.l.b16 %v641
        %v965 = vunpack.c.h.b16 %v641
        %v966 = vunpack.c.l.b16 %v642
        %v967 = vunpack.c.h.b16 %v642
        %v968 = vunpack.c.l.b16 %v643
        %v969 = vunpack.c.h.b16 %v643
        %v970 = vunpack.c.l.b16 %v644
        %v971 = vunpack.c.h.b16 %v644
        %v972 = vunpack.c.l.b16 %v645
        %v973 = vunpack.c.h.b16 %v645
        %v974 = vunpack.c.l.b16 %v646
        %v975 = vunpack.c.h.b16 %v646
        %v976 = vunpack.c.l.b16 %v647
        %v977 = vunpack.c.h.b16 %v647
        %v978 = vunpack.c.l.b16 %v648
        %v979 = vunpack.c.h.b16 %v648
        %v980 = vunpack.c.l.b16 %v649
        %v981 = vunpack.c.h.b16 %v649
        %v982 = vunpack.c.l.b16 %v650
        %v983 = vunpack.c.h.b16 %v650
        %v984 = vunpack.c.l.b16 %v651
        %v985 = vunpack.c.h.b16 %v651
        %v986 = vunpack.c.l.b16 %v652
        %v987 = vunpack.c.h.b16 %v652
        %v988 = vunpack.c.l.b16 %v653
        %v989 = vunpack.c.h.b16 %v653
        %v990 = vunpack.c.l.b16 %v654
        %v991 = vunpack.c.h.b16 %v654
        %v992 = vunpack.c.l.b16 %v655
        %v993 = vunpack.c.h.b16 %v655
        %v994 = vunpack.c.l.b16 %v656
        %v995 = vunpack.c.h.b16 %v656
        %v996 = vunpack.c.l.b16 %v657
        %v997 = vunpack.c.h.b16 %v657
        %v998 = vunpack.c.l.b16 %v658
        %v999 = vunpack.c.h.b16 %v658
        %v1000 = vunpack.c.l.b16 %v659
        %v1001 = vunpack.c.h.b16 %v659
        %v1002 = vunpack.c.l.b16 %v660
        %v1003 = vunpack.c.h.b16 %v660
        %v1004 = vunpack.c.l.b16 %v661
        %v1005 = vunpack.c.h.b16 %v661
        %v1006 = vunpack.c.l.b16 %v662
        %v1007 = vunpack.c.h.b16 %v662
        %v1008 = vunpack.c.l.b16 %v663
        %v1009 = vunpack.c.h.b16 %v663
        %v1010 = vunpack.c.l.b16 %v664
        %v1011 = vunpack.c.h.b16 %v664
        %v1012 = vunpack.c.l.b16 %v665
        %v1013 = vunpack.c.h.b16 %v665
        %v1014 = vunpack.c.l.b16 %v666
        %v1015 = vunpack.c.h.b16 %v666
        %v1016 = vunpack.c.l.b16 %v667
        %v1017 = vunpack.c.h.b16 %v667
        %v1018 = vunpack.c.l.b16 %v668
        %v1019 = vunpack.c.h.b16 %v668
        %v1020 = vunpack.c.l.b16 %v669
        %v1021 = vunpack.c.h.b16 %v669
        %v1022 = vunpack.c.l.b16 %v670
        %v1023 = vunpack.c.h.b16 %v670
        %v1024 = vunpack.c.l.b16 %v671
        %v1025 = vunpack.c.h.b16 %v671
        %v1026 = vunpack.c.l.b16 %v672
        %v1027 = vunpack.c.h.b16 %v672
        %v1028 = vunpack.c.l.b16 %v673
        %v1029 = vunpack.c.h.b16 %v673
        %v1030 = vunpack.c.l.b16 %v674
        %v1031 = vunpack.c.h.b16 %v674
        %v1032 = vunpack.c.l.b16 %v675
        %v1033 = vunpack.c.h.b16 %v675
        %v1034 = vunpack.c.l.b16 %v676
        %v1035 = vunpack.c.h.b16 %v676
        %v1036 = vunpack.c.l.b16 %v677
        %v1037 = vunpack.c.h.b16 %v677
        %v1038 = vunpack.c.l.b16 %v678
        %v1039 = vunpack.c.h.b16 %v678
        %v1040 = vunpack.c.l.b16 %v679
        %v1041 = vunpack.c.h.b16 %v679
        %v1042 = vunpack.c.l.b16 %v680
        %v1043 = vunpack.c.h.b16 %v680
        %v1044 = vunpack.c.l.b16 %v681
        %v1045 = vunpack.c.h.b16 %v681
        %v1046 = vunpack.c.l.b16 %v682
        %v1047 = vunpack.c.h.b16 %v682
        %v1048 = vunpack.c.l.b16 %v683
        %v1049 = vunpack.c.h.b16 %v683
        %v1050 = vunpack.c.l.b16 %v684
        %v1051 = vunpack.c.h.b16 %v684
        %v1052 = vunpack.c.l.b16 %v685
        %v1053 = vunpack.c.h.b16 %v685
        %v1054 = vunpack.c.l.b16 %v686
        %v1055 = vunpack.c.h.b16 %v686
        %v1056 = vunpack.c.l.b16 %v687
        %v1057 = vunpack.c.h.b16 %v687
        %v1058 = vunpack.c.l.b16 %v688
        %v1059 = vunpack.c.h.b16 %v688
        %v1060 = vunpack.c.l.b16 %v689
        %v1061 = vunpack.c.h.b16 %v689
        %v1062 = vunpack.c.l.b16 %v690
        %v1063 = vunpack.c.h.b16 %v690
        %v1064 = vunpack.c.l.b16 %v691
        %v1065 = vunpack.c.h.b16 %v691
        %v1066 = vunpack.c.l.b16 %v692
        %v1067 = vunpack.c.h.b16 %v692
        %v1068 = vunpack.c.l.b16 %v693
        %v1069 = vunpack.c.h.b16 %v693
        %v1070 = vunpack.c.l.b16 %v694
        %v1071 = vunpack.c.h.b16 %v694
        %v1072 = vunpack.c.l.b16 %v695
        %v1073 = vunpack.c.h.b16 %v695
        %v1074 = vunpack.c.l.b16 %v696
        %v1075 = vunpack.c.h.b16 %v696
        %v1076 = vunpack.c.l.b16 %v697
        %v1077 = vunpack.c.h.b16 %v697
        %v1078 = vunpack.c.l.b16 %v698
        %v1079 = vunpack.c.h.b16 %v698
        %v1080 = vunpack.c.l.b16 %v699
        %v1081 = vunpack.c.h.b16 %v699
        %v1082 = vunpack.c.l.b16 %v700
        %v1083 = vunpack.c.h.b16 %v700
        %v1084 = vunpack.c.l.b16 %v701
        %v1085 = vunpack.c.h.b16 %v701
        %v1086 = vunpack.c.l.b16 %v702
        %v1087 = vunpack.c.h.b16 %v702
        %v1088 = vunpack.c.l.b16 %v703
        %v1089 = vunpack.c.h.b16 %v703
        %v1090 = vunpack.c.l.b16 %v704
        %v1091 = vunpack.c.h.b16 %v704
        %v1092 = vunpack.c.l.b16 %v705
        %v1093 = vunpack.c.h.b16 %v705
        %v1094 = vunpack.c.l.b16 %v706
        %v1095 = vunpack.c.h.b16 %v706
        %v1096 = vunpack.c.l.b16 %v707
        %v1097 = vunpack.c.h.b16 %v707
        %v1098 = vunpack.c.l.b16 %v708
        %v1099 = vunpack.c.h.b16 %v708
        %v1100 = vunpack.c.l.b16 %v709
        %v1101 = vunpack.c.h.b16 %v709
        %v1102 = vunpack.c.l.b16 %v710
        %v1103 = vunpack.c.h.b16 %v710
        %v1104 = vunpack.c.l.b16 %v711
        %v1105 = vunpack.c.h.b16 %v711
        %v1106 = vpack.c.b16 %v854, %v850
        %v1107 = vpack.c.b16 %v855, %v851
        %v1108 = vpack.c.b16 %v856, %v852
        %v1109 = vpack.c.b16 %v857, %v853
        %v1110 = vpack.c.b16 %v862, %v858
        %v1111 = vpack.c.b16 %v863, %v859
        %v1112 = vpack.c.b16 %v864, %v860
        %v1113 = vpack.c.b16 %v865, %v861
        %v1114 = vpack.c.b16 %v870, %v866
        %v1115 = vpack.c.b16 %v871, %v867
        %v1116 = vpack.c.b16 %v872, %v868
        %v1117 = vpack.c.b16 %v873, %v869
        %v1118 = vpack.c.b16 %v878, %v874
        %v1119 = vpack.c.b16 %v879, %v875
        %v1120 = vpack.c.b16 %v880, %v876
        %v1121 = vpack.c.b16 %v881, %v877
        %v1122 = vpack.c.b16 %v886, %v882
        %v1123 = vpack.c.b16 %v887, %v883
        %v1124 = vpack.c.b16 %v888, %v884
        %v1125 = vpack.c.b16 %v889, %v885
        %v1126 = vpack.c.b16 %v894, %v890
        %v1127 = vpack.c.b16 %v895, %v891
        %v1128 = vpack.c.b16 %v896, %v892
        %v1129 = vpack.c.b16 %v897, %v893
        %v1130 = vpack.c.b16 %v902, %v898
        %v1131 = vpack.c.b16 %v903, %v899
        %v1132 = vpack.c.b16 %v904, %v900
        %v1133 = vpack.c.b16 %v905, %v901
        %v1134 = vpack.c.b16 %v910, %v906
        %v1135 = vpack.c.b16 %v911, %v907
        %v1136 = vpack.c.b16 %v912, %v908
        %v1137 = vpack.c.b16 %v913, %v909
        %v1138 = vpack.c.b16 %v918, %v914
        %v1139 = vpack.c.b16 %v919, %v915
        %v1140 = vpack.c.b16 %v920, %v916
        %v1141 = vpack.c.b16 %v921, %v917
        %v1142 = vpack.c.b16 %v926, %v922
        %v1143 = vpack.c.b16 %v927, %v923
        %v1144 = vpack.c.b16 %v928, %v924
        %v1145 = vpack.c.b16 %v929, %v925
        %v1146 = vpack.c.b16 %v934, %v930
        %v1147 = vpack.c.b16 %v935, %v931
        %v1148 = vpack.c.b16 %v936, %v932
        %v1149 = vpack.c.b16 %v937, %v933
        %v1150 = vpack.c.b16 %v942, %v938
        %v1151 = vpack.c.b16 %v943, %v939
        %v1152 = vpack.c.b16 %v944, %v940
        %v1153 = vpack.c.b16 %v945, %v941
        %v1154 = vpack.c.b16 %v950, %v946
        %v1155 = vpack.c.b16 %v951, %v947
        %v1156 = vpack.c.b16 %v952, %v948
        %v1157 = vpack.c.b16 %v953, %v949
        %v1158 = vpack.c.b16 %v958, %v954
        %v1159 = vpack.c.b16 %v959, %v955
        %v1160 = vpack.c.b16 %v960, %v956
        %v1161 = vpack.c.b16 %v961, %v957
        %v1162 = vpack.c.b16 %v966, %v962
        %v1163 = vpack.c.b16 %v967, %v963
        %v1164 = vpack.c.b16 %v968, %v964
        %v1165 = vpack.c.b16 %v969, %v965
        %v1166 = vpack.c.b16 %v974, %v970
        %v1167 = vpack.c.b16 %v975, %v971
        %v1168 = vpack.c.b16 %v976, %v972
        %v1169 = vpack.c.b16 %v977, %v973
        %v1170 = vpack.c.b16 %v982, %v978
        %v1171 = vpack.c.b16 %v983, %v979
        %v1172 = vpack.c.b16 %v984, %v980
        %v1173 = vpack.c.b16 %v985, %v981
        %v1174 = vpack.c.b16 %v990, %v986
        %v1175 = vpack.c.b16 %v991, %v987
        %v1176 = vpack.c.b16 %v992, %v988
        %v1177 = vpack.c.b16 %v993, %v989
        %v1178 = vpack.c.b16 %v998, %v994
        %v1179 = vpack.c.b16 %v999, %v995
        %v1180 = vpack.c.b16 %v1000, %v996
        %v1181 = vpack.c.b16 %v1001, %v997
        %v1182 = vpack.c.b16 %v1006, %v1002
        %v1183 = vpack.c.b16 %v1007, %v1003
        %v1184 = vpack.c.b16 %v1008, %v1004
        %v1185 = vpack.c.b16 %v1009, %v1005
        %v1186 = vpack.c.b16 %v1014, %v1010
        %v1187 = vpack.c.b16 %v1015, %v1011
        %v1188 = vpack.c.b16 %v1016, %v1012
        %v1189 = vpack.c.b16 %v1017, %v1013
        %v1190 = vpack.c.b16 %v1022, %v1018
        %v1191 = vpack.c.b16 %v1023, %v1019
        %v1192 = vpack.c.b16 %v1024, %v1020
        %v1193 = vpack.c.b16 %v1025, %v1021
        %v1194 = vpack.c.b16 %v1030, %v1026
        %v1195 = vpack.c.b16 %v1031, %v1027
        %v1196 = vpack.c.b16 %v1032, %v1028
        %v1197 = vpack.c.b16 %v1033, %v1029
        %v1198 = vpack.c.b16 %v1038, %v1034
        %v1199 = vpack.c.b16 %v1039, %v1035
        %v1200 = vpack.c.b16 %v1040, %v1036
        %v1201 = vpack.c.b16 %v1041, %v1037
        %v1202 = vpack.c.b16 %v1046, %v1042
        %v1203 = vpack.c.b16 %v1047, %v1043
        %v1204 = vpack.c.b16 %v1048, %v1044
        %v1205 = vpack.c.b16 %v1049, %v1045
        %v1206 = vpack.c.b16 %v1054, %v1050
        %v1207 = vpack.c.b16 %v1055, %v1051
        %v1208 = vpack.c.b16 %v1056, %v1052
        %v1209 = vpack.c.b16 %v1057, %v1053
        %v1210 = vpack.c.b16 %v1062, %v1058
        %v1211 = vpack.c.b16 %v1063, %v1059
        %v1212 = vpack.c.b16 %v1064, %v1060
        %v1213 = vpack.c.b16 %v1065, %v1061
        %v1214 = vpack.c.b16 %v1070, %v1066
        %v1215 = vpack.c.b16 %v1071, %v1067
        %v1216 = vpack.c.b16 %v1072, %v1068
        %v1217 = vpack.c.b16 %v1073, %v1069
        %v1218 = vpack.c.b16 %v1078, %v1074
        %v1219 = vpack.c.b16 %v1079, %v1075
        %v1220 = vpack.c.b16 %v1080, %v1076
        %v1221 = vpack.c.b16 %v1081, %v1077
        %v1222 = vpack.c.b16 %v1086, %v1082
        %v1223 = vpack.c.b16 %v1087, %v1083
        %v1224 = vpack.c.b16 %v1088, %v1084
        %v1225 = vpack.c.b16 %v1089, %v1085
        %v1226 = vpack.c.b16 %v1094, %v1090
        %v1227 = vpack.c.b16 %v1095, %v1091
        %v1228 = vpack.c.b16 %v1096, %v1092
        %v1229 = vpack.c.b16 %v1097, %v1093
        %v1230 = vpack.c.b16 %v1102, %v1098
        %v1231 = vpack.c.b16 %v1103, %v1099
        %v1232 = vpack.c.b16 %v1104, %v1100
        %v1233 = vpack.c.b16 %v1105, %v1101
        %1362 = vmatpush.bf16.msra.mxu0 %v1134
        %1363 = vmatpush.bf16.msra.mxu0 %v1130
        %1364 = vmatpush.bf16.msra.mxu0 %v1126
        %1365 = vmatpush.bf16.msra.mxu0 %v1122
        %1366 = vmatpush.bf16.msra.mxu0 %v1118
        %1367 = vmatpush.bf16.msra.mxu0 %v1114
        %1368 = vmatpush.bf16.msra.mxu0 %v1110
        %1369 = vmatpush.bf16.msra.mxu0 %v1106
        %1370 = vmatmul.bf16.gmra.mxu0 %v572
        %v1371 = vpop.f32.mrf.mxu0
        %v1372 = vadd.f32 %v714, %v1371
        %v1373 = vpop.f32.mrf.mxu0
        %v1374 = vadd.f32 %v714, %v1373
        %1375 = vmatmul.bf16.gmra.mxu0 %v576
        %v1376 = vpop.f32.mrf.mxu0
        %v1377 = vadd.f32 %v714, %v1376
        %v1378 = vpop.f32.mrf.mxu0
        %v1379 = vadd.f32 %v714, %v1378
        %1380 = vmatmul.bf16.gmra.mxu0 %v580
        %v1381 = vpop.f32.mrf.mxu0
        %v1382 = vadd.f32 %v714, %v1381
        %v1383 = vpop.f32.mrf.mxu0
        %1384 = vdwg.mxu0
        %1385 = vmatpush.bf16.msra.mxu0 %v1166
        %1386 = vmatpush.bf16.msra.mxu0 %v1162
        %1387 = vmatpush.bf16.msra.mxu0 %v1158
        %1388 = vmatpush.bf16.msra.mxu0 %v1154
        %1389 = vmatpush.bf16.msra.mxu0 %v1150
        %1390 = vmatpush.bf16.msra.mxu0 %v1146
        %1391 = vmatpush.bf16.msra.mxu0 %v1142
        %1392 = vmatpush.bf16.msra.mxu0 %v1138
        %1393 = vmatmul.bf16.gmra.mxu0 %v573
        %v1394 = vpop.f32.mrf.mxu0
        %v1395 = vadd.f32 %v1372, %v1394
        %v1396 = vpop.f32.mrf.mxu0
        %v1397 = vadd.f32 %v1374, %v1396
        %1398 = vmatmul.bf16.gmra.mxu0 %v577
        %v1399 = vpop.f32.mrf.mxu0
        %v1400 = vadd.f32 %v1377, %v1399
        %v1401 = vpop.f32.mrf.mxu0
        %v1402 = vadd.f32 %v1379, %v1401
        %1403 = vmatmul.bf16.gmra.mxu0 %v581
        %v1404 = vpop.f32.mrf.mxu0
        %v1405 = vadd.f32 %v1382, %v1404
        %v1406 = vpop.f32.mrf.mxu0
        %1407 = vdwg.mxu0
        %1408 = vmatpush.bf16.msra.mxu0 %v1198
        %1409 = vmatpush.bf16.msra.mxu0 %v1194
        %1410 = vmatpush.bf16.msra.mxu0 %v1190
        %1411 = vmatpush.bf16.msra.mxu0 %v1186
        %1412 = vmatpush.bf16.msra.mxu0 %v1182
        %1413 = vmatpush.bf16.msra.mxu0 %v1178
        %1414 = vmatpush.bf16.msra.mxu0 %v1174
        %1415 = vmatpush.bf16.msra.mxu0 %v1170
        %1416 = vmatmul.bf16.gmra.mxu0 %v574
        %v1417 = vpop.f32.mrf.mxu0
        %v1418 = vadd.f32 %v1395, %v1417
        %v1419 = vpop.f32.mrf.mxu0
        %v1420 = vadd.f32 %v1397, %v1419
        %1421 = vmatmul.bf16.gmra.mxu0 %v578
        %v1422 = vpop.f32.mrf.mxu0
        %v1423 = vadd.f32 %v1400, %v1422
        %v1424 = vpop.f32.mrf.mxu0
        %v1425 = vadd.f32 %v1402, %v1424
        %1426 = vmatmul.bf16.gmra.mxu0 %v582
        %v1427 = vpop.f32.mrf.mxu0
        %v1428 = vadd.f32 %v1405, %v1427
        %v1429 = vpop.f32.mrf.mxu0
        %1430 = vdwg.mxu0
        %1431 = vmatpush.bf16.msra.mxu0 %v1230
        %1432 = vmatpush.bf16.msra.mxu0 %v1226
        %1433 = vmatpush.bf16.msra.mxu0 %v1222
        %1434 = vmatpush.bf16.msra.mxu0 %v1218
        %1435 = vmatpush.bf16.msra.mxu0 %v1214
        %1436 = vmatpush.bf16.msra.mxu0 %v1210
        %1437 = vmatpush.bf16.msra.mxu0 %v1206
        %1438 = vmatpush.bf16.msra.mxu0 %v1202
        %1439 = vmatmul.bf16.gmra.mxu0 %v575
        %v1440 = vpop.f32.mrf.mxu0
        %v1441 = vadd.f32 %v1418, %v1440
        %v1442 = vpop.f32.mrf.mxu0
        %v1443 = vadd.f32 %v1420, %v1442
        %1444 = vmatmul.bf16.gmra.mxu0 %v579
        %v1445 = vpop.f32.mrf.mxu0
        %v1446 = vadd.f32 %v1423, %v1445
        %v1447 = vpop.f32.mrf.mxu0
        %v1448 = vadd.f32 %v1425, %v1447
        %1449 = vmatmul.bf16.gmra.mxu0 %v583
        %v1450 = vpop.f32.mrf.mxu0
        %v1451 = vadd.f32 %v1428, %v1450
        %v1452 = vpop.f32.mrf.mxu0
        %1453 = vdwg.mxu0
        %1454 = vmatpush.bf16.msra.mxu0 %v1135
        %1455 = vmatpush.bf16.msra.mxu0 %v1131
        %1456 = vmatpush.bf16.msra.mxu0 %v1127
        %1457 = vmatpush.bf16.msra.mxu0 %v1123
        %1458 = vmatpush.bf16.msra.mxu0 %v1119
        %1459 = vmatpush.bf16.msra.mxu0 %v1115
        %1460 = vmatpush.bf16.msra.mxu0 %v1111
        %1461 = vmatpush.bf16.msra.mxu0 %v1107
        %1462 = vmatmul.bf16.gmra.mxu0 %v572
        %v1463 = vpop.f32.mrf.mxu0
        %v1464 = vadd.f32 %v715, %v1463
        %v1465 = vpop.f32.mrf.mxu0
        %v1466 = vadd.f32 %v715, %v1465
        %1467 = vmatmul.bf16.gmra.mxu0 %v576
        %v1468 = vpop.f32.mrf.mxu0
        %v1469 = vadd.f32 %v715, %v1468
        %v1470 = vpop.f32.mrf.mxu0
        %v1471 = vadd.f32 %v715, %v1470
        %1472 = vmatmul.bf16.gmra.mxu0 %v580
        %v1473 = vpop.f32.mrf.mxu0
        %v1474 = vadd.f32 %v715, %v1473
        %v1475 = vpop.f32.mrf.mxu0
        %1476 = vdwg.mxu0
        %1477 = vmatpush.bf16.msra.mxu0 %v1167
        %1478 = vmatpush.bf16.msra.mxu0 %v1163
        %1479 = vmatpush.bf16.msra.mxu0 %v1159
        %1480 = vmatpush.bf16.msra.mxu0 %v1155
        %1481 = vmatpush.bf16.msra.mxu0 %v1151
        %1482 = vmatpush.bf16.msra.mxu0 %v1147
        %1483 = vmatpush.bf16.msra.mxu0 %v1143
        %1484 = vmatpush.bf16.msra.mxu0 %v1139
        %1485 = vmatmul.bf16.gmra.mxu0 %v573
        %v1486 = vpop.f32.mrf.mxu0
        %v1487 = vadd.f32 %v1464, %v1486
        %v1488 = vpop.f32.mrf.mxu0
        %v1489 = vadd.f32 %v1466, %v1488
        %1490 = vmatmul.bf16.gmra.mxu0 %v577
        %v1491 = vpop.f32.mrf.mxu0
        %v1492 = vadd.f32 %v1469, %v1491
        %v1493 = vpop.f32.mrf.mxu0
        %v1494 = vadd.f32 %v1471, %v1493
        %1495 = vmatmul.bf16.gmra.mxu0 %v581
        %v1496 = vpop.f32.mrf.mxu0
        %v1497 = vadd.f32 %v1474, %v1496
        %v1498 = vpop.f32.mrf.mxu0
        %1499 = vdwg.mxu0
        %1500 = vmatpush.bf16.msra.mxu0 %v1199
        %1501 = vmatpush.bf16.msra.mxu0 %v1195
        %1502 = vmatpush.bf16.msra.mxu0 %v1191
        %1503 = vmatpush.bf16.msra.mxu0 %v1187
        %1504 = vmatpush.bf16.msra.mxu0 %v1183
        %1505 = vmatpush.bf16.msra.mxu0 %v1179
        %1506 = vmatpush.bf16.msra.mxu0 %v1175
        %1507 = vmatpush.bf16.msra.mxu0 %v1171
        %1508 = vmatmul.bf16.gmra.mxu0 %v574
        %v1509 = vpop.f32.mrf.mxu0
        %v1510 = vadd.f32 %v1487, %v1509
        %v1511 = vpop.f32.mrf.mxu0
        %v1512 = vadd.f32 %v1489, %v1511
        %1513 = vmatmul.bf16.gmra.mxu0 %v578
        %v1514 = vpop.f32.mrf.mxu0
        %v1515 = vadd.f32 %v1492, %v1514
        %v1516 = vpop.f32.mrf.mxu0
        %v1517 = vadd.f32 %v1494, %v1516
        %1518 = vmatmul.bf16.gmra.mxu0 %v582
        %v1519 = vpop.f32.mrf.mxu0
        %v1520 = vadd.f32 %v1497, %v1519
        %v1521 = vpop.f32.mrf.mxu0
        %1522 = vdwg.mxu0
        %1523 = vmatpush.bf16.msra.mxu0 %v1231
        %1524 = vmatpush.bf16.msra.mxu0 %v1227
        %1525 = vmatpush.bf16.msra.mxu0 %v1223
        %1526 = vmatpush.bf16.msra.mxu0 %v1219
        %1527 = vmatpush.bf16.msra.mxu0 %v1215
        %1528 = vmatpush.bf16.msra.mxu0 %v1211
        %1529 = vmatpush.bf16.msra.mxu0 %v1207
        %1530 = vmatpush.bf16.msra.mxu0 %v1203
        %1531 = vmatmul.bf16.gmra.mxu0 %v575
        %v1532 = vpop.f32.mrf.mxu0
        %v1533 = vadd.f32 %v1510, %v1532
        %v1534 = vpop.f32.mrf.mxu0
        %v1535 = vadd.f32 %v1512, %v1534
        %1536 = vmatmul.bf16.gmra.mxu0 %v579
        %v1537 = vpop.f32.mrf.mxu0
        %v1538 = vadd.f32 %v1515, %v1537
        %v1539 = vpop.f32.mrf.mxu0
        %v1540 = vadd.f32 %v1517, %v1539
        %1541 = vmatmul.bf16.gmra.mxu0 %v583
        %v1542 = vpop.f32.mrf.mxu0
        %v1543 = vadd.f32 %v1520, %v1542
        %v1544 = vpop.f32.mrf.mxu0
        %1545 = vdwg.mxu0
        %1546 = vmatpush.bf16.msra.mxu0 %v1136
        %1547 = vmatpush.bf16.msra.mxu0 %v1132
        %1548 = vmatpush.bf16.msra.mxu0 %v1128
        %1549 = vmatpush.bf16.msra.mxu0 %v1124
        %1550 = vmatpush.bf16.msra.mxu0 %v1120
        %1551 = vmatpush.bf16.msra.mxu0 %v1116
        %1552 = vmatpush.bf16.msra.mxu0 %v1112
        %1553 = vmatpush.bf16.msra.mxu0 %v1108
        %1554 = vmatmul.bf16.gmra.mxu0 %v572
        %v1555 = vpop.f32.mrf.mxu0
        %v1556 = vadd.f32 %v716, %v1555
        %v1557 = vpop.f32.mrf.mxu0
        %v1558 = vadd.f32 %v716, %v1557
        %1559 = vmatmul.bf16.gmra.mxu0 %v576
        %v1560 = vpop.f32.mrf.mxu0
        %v1561 = vadd.f32 %v716, %v1560
        %v1562 = vpop.f32.mrf.mxu0
        %v1563 = vadd.f32 %v716, %v1562
        %1564 = vmatmul.bf16.gmra.mxu0 %v580
        %v1565 = vpop.f32.mrf.mxu0
        %v1566 = vadd.f32 %v716, %v1565
        %v1567 = vpop.f32.mrf.mxu0
        %1568 = vdwg.mxu0
        %1569 = vmatpush.bf16.msra.mxu0 %v1168
        %1570 = vmatpush.bf16.msra.mxu0 %v1164
        %1571 = vmatpush.bf16.msra.mxu0 %v1160
        %1572 = vmatpush.bf16.msra.mxu0 %v1156
        %1573 = vmatpush.bf16.msra.mxu0 %v1152
        %1574 = vmatpush.bf16.msra.mxu0 %v1148
        %1575 = vmatpush.bf16.msra.mxu0 %v1144
        %1576 = vmatpush.bf16.msra.mxu0 %v1140
        %1577 = vmatmul.bf16.gmra.mxu0 %v573
        %v1578 = vpop.f32.mrf.mxu0
        %v1579 = vadd.f32 %v1556, %v1578
        %v1580 = vpop.f32.mrf.mxu0
        %v1581 = vadd.f32 %v1558, %v1580
        %1582 = vmatmul.bf16.gmra.mxu0 %v577
        %v1583 = vpop.f32.mrf.mxu0
        %v1584 = vadd.f32 %v1561, %v1583
        %v1585 = vpop.f32.mrf.mxu0
        %v1586 = vadd.f32 %v1563, %v1585
        %1587 = vmatmul.bf16.gmra.mxu0 %v581
        %v1588 = vpop.f32.mrf.mxu0
        %v1589 = vadd.f32 %v1566, %v1588
        %v1590 = vpop.f32.mrf.mxu0
        %1591 = vdwg.mxu0
        %1592 = vmatpush.bf16.msra.mxu0 %v1200
        %1593 = vmatpush.bf16.msra.mxu0 %v1196
        %1594 = vmatpush.bf16.msra.mxu0 %v1192
        %1595 = vmatpush.bf16.msra.mxu0 %v1188
        %1596 = vmatpush.bf16.msra.mxu0 %v1184
        %1597 = vmatpush.bf16.msra.mxu0 %v1180
        %1598 = vmatpush.bf16.msra.mxu0 %v1176
        %1599 = vmatpush.bf16.msra.mxu0 %v1172
        %1600 = vmatmul.bf16.gmra.mxu0 %v574
        %v1601 = vpop.f32.mrf.mxu0
        %v1602 = vadd.f32 %v1579, %v1601
        %v1603 = vpop.f32.mrf.mxu0
        %v1604 = vadd.f32 %v1581, %v1603
        %1605 = vmatmul.bf16.gmra.mxu0 %v578
        %v1606 = vpop.f32.mrf.mxu0
        %v1607 = vadd.f32 %v1584, %v1606
        %v1608 = vpop.f32.mrf.mxu0
        %v1609 = vadd.f32 %v1586, %v1608
        %1610 = vmatmul.bf16.gmra.mxu0 %v582
        %v1611 = vpop.f32.mrf.mxu0
        %v1612 = vadd.f32 %v1589, %v1611
        %v1613 = vpop.f32.mrf.mxu0
        %1614 = vdwg.mxu0
        %1615 = vmatpush.bf16.msra.mxu0 %v1232
        %1616 = vmatpush.bf16.msra.mxu0 %v1228
        %1617 = vmatpush.bf16.msra.mxu0 %v1224
        %1618 = vmatpush.bf16.msra.mxu0 %v1220
        %1619 = vmatpush.bf16.msra.mxu0 %v1216
        %1620 = vmatpush.bf16.msra.mxu0 %v1212
        %1621 = vmatpush.bf16.msra.mxu0 %v1208
        %1622 = vmatpush.bf16.msra.mxu0 %v1204
        %1623 = vmatmul.bf16.gmra.mxu0 %v575
        %v1624 = vpop.f32.mrf.mxu0
        %v1625 = vadd.f32 %v1602, %v1624
        %v1626 = vpop.f32.mrf.mxu0
        %v1627 = vadd.f32 %v1604, %v1626
        %1628 = vmatmul.bf16.gmra.mxu0 %v579
        %v1629 = vpop.f32.mrf.mxu0
        %v1630 = vadd.f32 %v1607, %v1629
        %v1631 = vpop.f32.mrf.mxu0
        %v1632 = vadd.f32 %v1609, %v1631
        %1633 = vmatmul.bf16.gmra.mxu0 %v583
        %v1634 = vpop.f32.mrf.mxu0
        %v1635 = vadd.f32 %v1612, %v1634
        %v1636 = vpop.f32.mrf.mxu0
        %1637 = vdwg.mxu0
        %1638 = vmatpush.bf16.msra.mxu0 %v1137
        %1639 = vmatpush.bf16.msra.mxu0 %v1133
        %1640 = vmatpush.bf16.msra.mxu0 %v1129
        %1641 = vmatpush.bf16.msra.mxu0 %v1125
        %1642 = vmatpush.bf16.msra.mxu0 %v1121
        %1643 = vmatpush.bf16.msra.mxu0 %v1117
        %1644 = vmatpush.bf16.msra.mxu0 %v1113
        %1645 = vmatpush.bf16.msra.mxu0 %v1109
        %1646 = vmatmul.bf16.gmra.mxu0 %v572
        %v1647 = vpop.f32.mrf.mxu0
        %v1648 = vadd.f32 %v717, %v1647
        %v1649 = vpop.f32.mrf.mxu0
        %v1650 = vadd.f32 %v717, %v1649
        %1651 = vmatmul.bf16.gmra.mxu0 %v576
        %v1652 = vpop.f32.mrf.mxu0
        %v1653 = vadd.f32 %v717, %v1652
        %v1654 = vpop.f32.mrf.mxu0
        %v1655 = vadd.f32 %v717, %v1654
        %1656 = vmatmul.bf16.gmra.mxu0 %v580
        %v1657 = vpop.f32.mrf.mxu0
        %v1658 = vadd.f32 %v717, %v1657
        %v1659 = vpop.f32.mrf.mxu0
        %1660 = vdwg.mxu0
        %1661 = vmatpush.bf16.msra.mxu0 %v1169
        %1662 = vmatpush.bf16.msra.mxu0 %v1165
        %1663 = vmatpush.bf16.msra.mxu0 %v1161
        %1664 = vmatpush.bf16.msra.mxu0 %v1157
        %1665 = vmatpush.bf16.msra.mxu0 %v1153
        %1666 = vmatpush.bf16.msra.mxu0 %v1149
        %1667 = vmatpush.bf16.msra.mxu0 %v1145
        %1668 = vmatpush.bf16.msra.mxu0 %v1141
        %1669 = vmatmul.bf16.gmra.mxu0 %v573
        %v1670 = vpop.f32.mrf.mxu0
        %v1671 = vadd.f32 %v1648, %v1670
        %v1672 = vpop.f32.mrf.mxu0
        %v1673 = vadd.f32 %v1650, %v1672
        %1674 = vmatmul.bf16.gmra.mxu0 %v577
        %v1675 = vpop.f32.mrf.mxu0
        %v1676 = vadd.f32 %v1653, %v1675
        %v1677 = vpop.f32.mrf.mxu0
        %v1678 = vadd.f32 %v1655, %v1677
        %1679 = vmatmul.bf16.gmra.mxu0 %v581
        %v1680 = vpop.f32.mrf.mxu0
        %v1681 = vadd.f32 %v1658, %v1680
        %v1682 = vpop.f32.mrf.mxu0
        %1683 = vdwg.mxu0
        %1684 = vmatpush.bf16.msra.mxu0 %v1201
        %1685 = vmatpush.bf16.msra.mxu0 %v1197
        %1686 = vmatpush.bf16.msra.mxu0 %v1193
        %1687 = vmatpush.bf16.msra.mxu0 %v1189
        %1688 = vmatpush.bf16.msra.mxu0 %v1185
        %1689 = vmatpush.bf16.msra.mxu0 %v1181
        %1690 = vmatpush.bf16.msra.mxu0 %v1177
        %1691 = vmatpush.bf16.msra.mxu0 %v1173
        %1692 = vmatmul.bf16.gmra.mxu0 %v574
        %v1693 = vpop.f32.mrf.mxu0
        %v1694 = vadd.f32 %v1671, %v1693
        %v1695 = vpop.f32.mrf.mxu0
        %v1696 = vadd.f32 %v1673, %v1695
        %1697 = vmatmul.bf16.gmra.mxu0 %v578
        %v1698 = vpop.f32.mrf.mxu0
        %v1699 = vadd.f32 %v1676, %v1698
        %v1700 = vpop.f32.mrf.mxu0
        %v1701 = vadd.f32 %v1678, %v1700
        %1702 = vmatmul.bf16.gmra.mxu0 %v582
        %v1703 = vpop.f32.mrf.mxu0
        %v1704 = vadd.f32 %v1681, %v1703
        %v1705 = vpop.f32.mrf.mxu0
        %1706 = vdwg.mxu0
        %1707 = vmatpush.bf16.msra.mxu0 %v1233
        %1708 = vmatpush.bf16.msra.mxu0 %v1229
        %1709 = vmatpush.bf16.msra.mxu0 %v1225
        %1710 = vmatpush.bf16.msra.mxu0 %v1221
        %1711 = vmatpush.bf16.msra.mxu0 %v1217
        %1712 = vmatpush.bf16.msra.mxu0 %v1213
        %1713 = vmatpush.bf16.msra.mxu0 %v1209
        %1714 = vmatpush.bf16.msra.mxu0 %v1205
        %1715 = vmatmul.bf16.gmra.mxu0 %v575
        %v1716 = vpop.f32.mrf.mxu0
        %v1717 = vadd.f32 %v1694, %v1716
        %v1718 = vpop.f32.mrf.mxu0
        %v1719 = vadd.f32 %v1696, %v1718
        %1720 = vmatmul.bf16.gmra.mxu0 %v579
        %v1721 = vpop.f32.mrf.mxu0
        %v1722 = vadd.f32 %v1699, %v1721
        %v1723 = vpop.f32.mrf.mxu0
        %v1724 = vadd.f32 %v1701, %v1723
        %1725 = vmatmul.bf16.gmra.mxu0 %v583
        %v1726 = vpop.f32.mrf.mxu0
        %v1727 = vadd.f32 %v1704, %v1726
        %v1728 = vpop.f32.mrf.mxu0
        %1729 = vdwg.mxu0
        %v1730 = vmax.f32 %v1441, 0.0
        %v1731 = vmax.f32 %v1533, 0.0
        %v1732 = vmax.f32 %v1625, 0.0
        %v1733 = vmax.f32 %v1717, 0.0
        %v1734 = vmax.f32 %v1443, 0.0
        %v1735 = vmax.f32 %v1535, 0.0
        %v1736 = vmax.f32 %v1627, 0.0
        %v1737 = vmax.f32 %v1719, 0.0
        %v1738 = vmax.f32 %v1446, 0.0
        %v1739 = vmax.f32 %v1538, 0.0
        %v1740 = vmax.f32 %v1630, 0.0
        %v1741 = vmax.f32 %v1722, 0.0
        %v1742 = vmax.f32 %v1448, 0.0
        %v1743 = vmax.f32 %v1540, 0.0
        %v1744 = vmax.f32 %v1632, 0.0
        %v1745 = vmax.f32 %v1724, 0.0
        %v1746 = vmax.f32 %v1451, 0.0
        %v1747 = vmax.f32 %v1543, 0.0
        %v1748 = vmax.f32 %v1635, 0.0
        %v1749 = vmax.f32 %v1727, 0.0
        %v1750 = vpack.c.bf16 %v1734, %v1730
        %v1751 = vpack.c.bf16 %v1735, %v1731
        %v1752 = vpack.c.bf16 %v1736, %v1732
        %v1753 = vpack.c.bf16 %v1737, %v1733
        %v1754 = vpack.c.bf16 %v1742, %v1738
        %v1755 = vpack.c.bf16 %v1743, %v1739
        %v1756 = vpack.c.bf16 %v1744, %v1740
        %v1757 = vpack.c.bf16 %v1745, %v1741
        %v1758 = vpack.c.bf16 %v1746, %v1746
        %v1759 = vpack.c.bf16 %v1747, %v1747
        %v1760 = vpack.c.bf16 %v1748, %v1748
        %v1761 = vpack.c.bf16 %v1749, %v1749
        %v1762 = vld [vmem:[#allocation4] sm:$0xff]
        %v1763 = vld [vmem:[#allocation4 + $0x8] sm:$0xff]
        %v1764 = vld [vmem:[#allocation4 + $0x10] sm:$0xff]
        %v1765 = vld [vmem:[#allocation4 + $0x18] sm:$0xff]
        %v1766 = vld [vmem:[#allocation4 + $0x20] sm:$0xff]
        %v1767 = vld [vmem:[#allocation4 + $0x28] sm:$0xff]
        %v1768 = vld [vmem:[#allocation4 + $0x30] sm:$0xff]
        %v1769 = vld [vmem:[#allocation4 + $0x38] sm:$0xff]
        %v1770 = vld [vmem:[#allocation4 + $0x40] sm:$0xff]
        %v1771 = vld [vmem:[#allocation4 + $0x48] sm:$0xff]
        %v1772 = vld [vmem:[#allocation4 + $0x50] sm:$0xff]
        %v1773 = vld [vmem:[#allocation4 + $0x58] sm:$0xff]
        %v1774 = vld [vmem:[#allocation4 + $0x60] sm:$0xff]
        %v1775 = vld [vmem:[#allocation4 + $0x68] sm:$0xff]
        %v1776 = vld [vmem:[#allocation4 + $0x70] sm:$0xff]
        %v1777 = vld [vmem:[#allocation4 + $0x78] sm:$0xff]
        %v1778 = vld [vmem:[#allocation4 + $0x80] sm:$0xff]
        %v1779 = vld [vmem:[#allocation4 + $0x88] sm:$0xff]
        %v1780 = vld [vmem:[#allocation4 + $0x90] sm:$0xff]
        %v1781 = vld [vmem:[#allocation4 + $0x98] sm:$0xff]
        %v1782 = vld [vmem:[#allocation4 + $0xa0] sm:$0xff]
        %v1783 = vld [vmem:[#allocation4 + $0xa8] sm:$0xff]
        %v1784 = vld [vmem:[#allocation4 + $0xb0] sm:$0xff]
        %v1785 = vld [vmem:[#allocation4 + $0xb8] sm:$0xff]
        %v1786 = vld [vmem:[#allocation4 + $0xc0] sm:$0xff]
        %v1787 = vld [vmem:[#allocation4 + $0xc8] sm:$0xff]
        %v1788 = vld [vmem:[#allocation4 + $0xd0] sm:$0xff]
        %v1789 = vld [vmem:[#allocation4 + $0xd8] sm:$0xff]
        %v1790 = vld [vmem:[#allocation4 + $0xe0] sm:$0xff]
        %v1791 = vld [vmem:[#allocation4 + $0xe8] sm:$0xff]
        %v1792 = vld [vmem:[#allocation4 + $0xf0] sm:$0xff]
        %v1793 = vld [vmem:[#allocation4 + $0xf8] sm:$0xff]
        %v1794 = vld [vmem:[#allocation4 + $0x100] sm:$0xff]
        %v1795 = vld [vmem:[#allocation4 + $0x108] sm:$0xff]
        %v1796 = vld [vmem:[#allocation4 + $0x110] sm:$0xff]
        %v1797 = vld [vmem:[#allocation4 + $0x118] sm:$0xff]
        %v1798 = vld [vmem:[#allocation4 + $0x120] sm:$0xff]
        %v1799 = vld [vmem:[#allocation4 + $0x128] sm:$0xff]
        %v1800 = vld [vmem:[#allocation4 + $0x130] sm:$0xff]
        %v1801 = vld [vmem:[#allocation4 + $0x138] sm:$0xff]
        %v1802 = vld [vmem:[#allocation4 + $0x140] sm:$0xff]
        %v1803 = vld [vmem:[#allocation4 + $0x148] sm:$0xff]
        %v1804 = vld [vmem:[#allocation4 + $0x150] sm:$0xff]
        %v1805 = vld [vmem:[#allocation4 + $0x158] sm:$0xff]
        %v1806 = vld [vmem:[#allocation4 + $0x160] sm:$0xff]
        %v1807 = vld [vmem:[#allocation4 + $0x168] sm:$0xff]
        %v1808 = vld [vmem:[#allocation4 + $0x170] sm:$0xff]
        %v1809 = vld [vmem:[#allocation4 + $0x178] sm:$0xff]
        %v1810 = vld [vmem:[#allocation4 + $0x180] sm:$0xff]
        %v1811 = vld [vmem:[#allocation4 + $0x188] sm:$0xff]
        %v1812 = vld [vmem:[#allocation4 + $0x190] sm:$0xff]
        %v1813 = vld [vmem:[#allocation4 + $0x198] sm:$0xff]
        %v1814 = vld [vmem:[#allocation4 + $0x1a0] sm:$0xff]
        %v1815 = vld [vmem:[#allocation4 + $0x1a8] sm:$0xff]
        %v1816 = vld [vmem:[#allocation4 + $0x1b0] sm:$0xff]
        %v1817 = vld [vmem:[#allocation4 + $0x1b8] sm:$0xff]
        %v1818 = vld [vmem:[#allocation4 + $0x1c0] sm:$0xff]
        %v1819 = vld [vmem:[#allocation4 + $0x1c8] sm:$0xff]
        %v1820 = vld [vmem:[#allocation4 + $0x1d0] sm:$0xff]
        %v1821 = vld [vmem:[#allocation4 + $0x1d8] sm:$0xff]
        %v1822 = vld [vmem:[#allocation4 + $0x1e0] sm:$0xff]
        %v1823 = vld [vmem:[#allocation4 + $0x1e8] sm:$0xff]
        %v1824 = vld [vmem:[#allocation4 + $0x1f0] sm:$0xff]
        %v1825 = vld [vmem:[#allocation4 + $0x1f8] sm:$0xff]
        %v1826 = vld [vmem:[#allocation4 + $0x200] sm:$0xff]
        %v1827 = vld [vmem:[#allocation4 + $0x208] sm:$0xff]
        %v1828 = vld [vmem:[#allocation4 + $0x210] sm:$0xff]
        %v1829 = vld [vmem:[#allocation4 + $0x218] sm:$0xff]
        %v1830 = vld [vmem:[#allocation4 + $0x220] sm:$0xff]
        %v1831 = vld [vmem:[#allocation4 + $0x228] sm:$0xff]
        %v1832 = vld [vmem:[#allocation4 + $0x230] sm:$0xff]
        %v1833 = vld [vmem:[#allocation4 + $0x238] sm:$0xff]
        %v1834 = vld [vmem:[#allocation4 + $0x240] sm:$0xff]
        %v1835 = vld [vmem:[#allocation4 + $0x248] sm:$0xff]
        %v1836 = vld [vmem:[#allocation4 + $0x250] sm:$0xff]
        %v1837 = vld [vmem:[#allocation4 + $0x258] sm:$0xff]
        %v1838 = vld [vmem:[#allocation4 + $0x260] sm:$0xff]
        %v1839 = vld [vmem:[#allocation4 + $0x268] sm:$0xff]
        %v1840 = vld [vmem:[#allocation4 + $0x270] sm:$0xff]
        %v1841 = vld [vmem:[#allocation4 + $0x278] sm:$0xff]
        %v1842 = vld [vmem:[#allocation4 + $0x280] sm:$0xff]
        %v1843 = vld [vmem:[#allocation4 + $0x288] sm:$0xff]
        %v1844 = vld [vmem:[#allocation4 + $0x290] sm:$0xff]
        %v1845 = vld [vmem:[#allocation4 + $0x298] sm:$0xff]
        %v1846 = vld [vmem:[#allocation4 + $0x2a0] sm:$0xff]
        %v1847 = vld [vmem:[#allocation4 + $0x2a8] sm:$0xff]
        %v1848 = vld [vmem:[#allocation4 + $0x2b0] sm:$0xff]
        %v1849 = vld [vmem:[#allocation4 + $0x2b8] sm:$0xff]
        %v1850 = vld [vmem:[#allocation4 + $0x2c0] sm:$0xff]
        %v1851 = vld [vmem:[#allocation4 + $0x2c8] sm:$0xff]
        %v1852 = vld [vmem:[#allocation4 + $0x2d0] sm:$0xff]
        %v1853 = vld [vmem:[#allocation4 + $0x2d8] sm:$0xff]
        %v1854 = vld [vmem:[#allocation4 + $0x2e0] sm:$0xff]
        %v1855 = vld [vmem:[#allocation4 + $0x2e8] sm:$0xff]
        %v1856 = vld [vmem:[#allocation4 + $0x2f0] sm:$0xff]
        %v1857 = vld [vmem:[#allocation4 + $0x2f8] sm:$0xff]
        %v1858 = vld [vmem:[#allocation4 + $0x300] sm:$0xff]
        %v1859 = vld [vmem:[#allocation4 + $0x308] sm:$0xff]
        %v1860 = vld [vmem:[#allocation4 + $0x310] sm:$0xff]
        %v1861 = vld [vmem:[#allocation4 + $0x318] sm:$0xff]
        %v1862 = vld [vmem:[#allocation4 + $0x320] sm:$0xff]
        %v1863 = vld [vmem:[#allocation4 + $0x328] sm:$0xff]
        %v1864 = vld [vmem:[#allocation4 + $0x330] sm:$0xff]
        %v1865 = vld [vmem:[#allocation4 + $0x338] sm:$0xff]
        %v1866 = vld [vmem:[#allocation4 + $0x340] sm:$0xff]
        %v1867 = vld [vmem:[#allocation4 + $0x348] sm:$0xff]
        %v1868 = vld [vmem:[#allocation4 + $0x350] sm:$0xff]
        %v1869 = vld [vmem:[#allocation4 + $0x358] sm:$0xff]
        %v1870 = vld [vmem:[#allocation4 + $0x360] sm:$0xff]
        %v1871 = vld [vmem:[#allocation4 + $0x368] sm:$0xff]
        %v1872 = vld [vmem:[#allocation4 + $0x370] sm:$0xff]
        %v1873 = vld [vmem:[#allocation4 + $0x378] sm:$0xff]
        %v1874 = vld [vmem:[#allocation4 + $0x380] sm:$0xff]
        %v1875 = vld [vmem:[#allocation4 + $0x388] sm:$0xff]
        %v1876 = vld [vmem:[#allocation4 + $0x390] sm:$0xff]
        %v1877 = vld [vmem:[#allocation4 + $0x398] sm:$0xff]
        %v1878 = vld [vmem:[#allocation4 + $0x3a0] sm:$0xff]
        %v1879 = vld [vmem:[#allocation4 + $0x3a8] sm:$0xff]
        %v1880 = vld [vmem:[#allocation4 + $0x3b0] sm:$0xff]
        %v1881 = vld [vmem:[#allocation4 + $0x3b8] sm:$0xff]
        %v1882 = vld [vmem:[#allocation4 + $0x3c0] sm:$0xff]
        %v1883 = vld [vmem:[#allocation4 + $0x3c8] sm:$0xff]
        %v1884 = vld [vmem:[#allocation4 + $0x3d0] sm:$0xff]
        %v1885 = vld [vmem:[#allocation4 + $0x3d8] sm:$0xff]
        %v1886 = vld [vmem:[#allocation4 + $0x3e0] sm:$0xff]
        %v1887 = vld [vmem:[#allocation4 + $0x3e8] sm:$0xff]
        %v1888 = vld [vmem:[#allocation4 + $0x3f0] sm:$0xff]
        %v1889 = vld [vmem:[#allocation4 + $0x3f8] sm:$0xff]
        %v1890 = vld [vmem:[%s6] sm:$0xf]
        %v1892 = vperm.slane %v1890, 0
        %v1893 = vperm.slane %v1890, 1
        %v1894 = vperm.slane %v1890, 2
        %v1895 = vperm.slane %v1890, 3
        %v2028 = vunpack.c.l.b16 %v1762
        %v2029 = vunpack.c.h.b16 %v1762
        %v2030 = vunpack.c.l.b16 %v1763
        %v2031 = vunpack.c.h.b16 %v1763
        %v2032 = vunpack.c.l.b16 %v1764
        %v2033 = vunpack.c.h.b16 %v1764
        %v2034 = vunpack.c.l.b16 %v1765
        %v2035 = vunpack.c.h.b16 %v1765
        %v2036 = vunpack.c.l.b16 %v1766
        %v2037 = vunpack.c.h.b16 %v1766
        %v2038 = vunpack.c.l.b16 %v1767
        %v2039 = vunpack.c.h.b16 %v1767
        %v2040 = vunpack.c.l.b16 %v1768
        %v2041 = vunpack.c.h.b16 %v1768
        %v2042 = vunpack.c.l.b16 %v1769
        %v2043 = vunpack.c.h.b16 %v1769
        %v2044 = vunpack.c.l.b16 %v1770
        %v2045 = vunpack.c.h.b16 %v1770
        %v2046 = vunpack.c.l.b16 %v1771
        %v2047 = vunpack.c.h.b16 %v1771
        %v2048 = vunpack.c.l.b16 %v1772
        %v2049 = vunpack.c.h.b16 %v1772
        %v2050 = vunpack.c.l.b16 %v1773
        %v2051 = vunpack.c.h.b16 %v1773
        %v2052 = vunpack.c.l.b16 %v1774
        %v2053 = vunpack.c.h.b16 %v1774
        %v2054 = vunpack.c.l.b16 %v1775
        %v2055 = vunpack.c.h.b16 %v1775
        %v2056 = vunpack.c.l.b16 %v1776
        %v2057 = vunpack.c.h.b16 %v1776
        %v2058 = vunpack.c.l.b16 %v1777
        %v2059 = vunpack.c.h.b16 %v1777
        %v2060 = vunpack.c.l.b16 %v1778
        %v2061 = vunpack.c.h.b16 %v1778
        %v2062 = vunpack.c.l.b16 %v1779
        %v2063 = vunpack.c.h.b16 %v1779
        %v2064 = vunpack.c.l.b16 %v1780
        %v2065 = vunpack.c.h.b16 %v1780
        %v2066 = vunpack.c.l.b16 %v1781
        %v2067 = vunpack.c.h.b16 %v1781
        %v2068 = vunpack.c.l.b16 %v1782
        %v2069 = vunpack.c.h.b16 %v1782
        %v2070 = vunpack.c.l.b16 %v1783
        %v2071 = vunpack.c.h.b16 %v1783
        %v2072 = vunpack.c.l.b16 %v1784
        %v2073 = vunpack.c.h.b16 %v1784
        %v2074 = vunpack.c.l.b16 %v1785
        %v2075 = vunpack.c.h.b16 %v1785
        %v2076 = vunpack.c.l.b16 %v1786
        %v2077 = vunpack.c.h.b16 %v1786
        %v2078 = vunpack.c.l.b16 %v1787
        %v2079 = vunpack.c.h.b16 %v1787
        %v2080 = vunpack.c.l.b16 %v1788
        %v2081 = vunpack.c.h.b16 %v1788
        %v2082 = vunpack.c.l.b16 %v1789
        %v2083 = vunpack.c.h.b16 %v1789
        %v2084 = vunpack.c.l.b16 %v1790
        %v2085 = vunpack.c.h.b16 %v1790
        %v2086 = vunpack.c.l.b16 %v1791
        %v2087 = vunpack.c.h.b16 %v1791
        %v2088 = vunpack.c.l.b16 %v1792
        %v2089 = vunpack.c.h.b16 %v1792
        %v2090 = vunpack.c.l.b16 %v1793
        %v2091 = vunpack.c.h.b16 %v1793
        %v2092 = vunpack.c.l.b16 %v1794
        %v2093 = vunpack.c.h.b16 %v1794
        %v2094 = vunpack.c.l.b16 %v1795
        %v2095 = vunpack.c.h.b16 %v1795
        %v2096 = vunpack.c.l.b16 %v1796
        %v2097 = vunpack.c.h.b16 %v1796
        %v2098 = vunpack.c.l.b16 %v1797
        %v2099 = vunpack.c.h.b16 %v1797
        %v2100 = vunpack.c.l.b16 %v1798
        %v2101 = vunpack.c.h.b16 %v1798
        %v2102 = vunpack.c.l.b16 %v1799
        %v2103 = vunpack.c.h.b16 %v1799
        %v2104 = vunpack.c.l.b16 %v1800
        %v2105 = vunpack.c.h.b16 %v1800
        %v2106 = vunpack.c.l.b16 %v1801
        %v2107 = vunpack.c.h.b16 %v1801
        %v2108 = vunpack.c.l.b16 %v1802
        %v2109 = vunpack.c.h.b16 %v1802
        %v2110 = vunpack.c.l.b16 %v1803
        %v2111 = vunpack.c.h.b16 %v1803
        %v2112 = vunpack.c.l.b16 %v1804
        %v2113 = vunpack.c.h.b16 %v1804
        %v2114 = vunpack.c.l.b16 %v1805
        %v2115 = vunpack.c.h.b16 %v1805
        %v2116 = vunpack.c.l.b16 %v1806
        %v2117 = vunpack.c.h.b16 %v1806
        %v2118 = vunpack.c.l.b16 %v1807
        %v2119 = vunpack.c.h.b16 %v1807
        %v2120 = vunpack.c.l.b16 %v1808
        %v2121 = vunpack.c.h.b16 %v1808
        %v2122 = vunpack.c.l.b16 %v1809
        %v2123 = vunpack.c.h.b16 %v1809
        %v2124 = vunpack.c.l.b16 %v1810
        %v2125 = vunpack.c.h.b16 %v1810
        %v2126 = vunpack.c.l.b16 %v1811
        %v2127 = vunpack.c.h.b16 %v1811
        %v2128 = vunpack.c.l.b16 %v1812
        %v2129 = vunpack.c.h.b16 %v1812
        %v2130 = vunpack.c.l.b16 %v1813
        %v2131 = vunpack.c.h.b16 %v1813
        %v2132 = vunpack.c.l.b16 %v1814
        %v2133 = vunpack.c.h.b16 %v1814
        %v2134 = vunpack.c.l.b16 %v1815
        %v2135 = vunpack.c.h.b16 %v1815
        %v2136 = vunpack.c.l.b16 %v1816
        %v2137 = vunpack.c.h.b16 %v1816
        %v2138 = vunpack.c.l.b16 %v1817
        %v2139 = vunpack.c.h.b16 %v1817
        %v2140 = vunpack.c.l.b16 %v1818
        %v2141 = vunpack.c.h.b16 %v1818
        %v2142 = vunpack.c.l.b16 %v1819
        %v2143 = vunpack.c.h.b16 %v1819
        %v2144 = vunpack.c.l.b16 %v1820
        %v2145 = vunpack.c.h.b16 %v1820
        %v2146 = vunpack.c.l.b16 %v1821
        %v2147 = vunpack.c.h.b16 %v1821
        %v2148 = vunpack.c.l.b16 %v1822
        %v2149 = vunpack.c.h.b16 %v1822
        %v2150 = vunpack.c.l.b16 %v1823
        %v2151 = vunpack.c.h.b16 %v1823
        %v2152 = vunpack.c.l.b16 %v1824
        %v2153 = vunpack.c.h.b16 %v1824
        %v2154 = vunpack.c.l.b16 %v1825
        %v2155 = vunpack.c.h.b16 %v1825
        %v2156 = vunpack.c.l.b16 %v1826
        %v2157 = vunpack.c.h.b16 %v1826
        %v2158 = vunpack.c.l.b16 %v1827
        %v2159 = vunpack.c.h.b16 %v1827
        %v2160 = vunpack.c.l.b16 %v1828
        %v2161 = vunpack.c.h.b16 %v1828
        %v2162 = vunpack.c.l.b16 %v1829
        %v2163 = vunpack.c.h.b16 %v1829
        %v2164 = vunpack.c.l.b16 %v1830
        %v2165 = vunpack.c.h.b16 %v1830
        %v2166 = vunpack.c.l.b16 %v1831
        %v2167 = vunpack.c.h.b16 %v1831
        %v2168 = vunpack.c.l.b16 %v1832
        %v2169 = vunpack.c.h.b16 %v1832
        %v2170 = vunpack.c.l.b16 %v1833
        %v2171 = vunpack.c.h.b16 %v1833
        %v2172 = vunpack.c.l.b16 %v1834
        %v2173 = vunpack.c.h.b16 %v1834
        %v2174 = vunpack.c.l.b16 %v1835
        %v2175 = vunpack.c.h.b16 %v1835
        %v2176 = vunpack.c.l.b16 %v1836
        %v2177 = vunpack.c.h.b16 %v1836
        %v2178 = vunpack.c.l.b16 %v1837
        %v2179 = vunpack.c.h.b16 %v1837
        %v2180 = vunpack.c.l.b16 %v1838
        %v2181 = vunpack.c.h.b16 %v1838
        %v2182 = vunpack.c.l.b16 %v1839
        %v2183 = vunpack.c.h.b16 %v1839
        %v2184 = vunpack.c.l.b16 %v1840
        %v2185 = vunpack.c.h.b16 %v1840
        %v2186 = vunpack.c.l.b16 %v1841
        %v2187 = vunpack.c.h.b16 %v1841
        %v2188 = vunpack.c.l.b16 %v1842
        %v2189 = vunpack.c.h.b16 %v1842
        %v2190 = vunpack.c.l.b16 %v1843
        %v2191 = vunpack.c.h.b16 %v1843
        %v2192 = vunpack.c.l.b16 %v1844
        %v2193 = vunpack.c.h.b16 %v1844
        %v2194 = vunpack.c.l.b16 %v1845
        %v2195 = vunpack.c.h.b16 %v1845
        %v2196 = vunpack.c.l.b16 %v1846
        %v2197 = vunpack.c.h.b16 %v1846
        %v2198 = vunpack.c.l.b16 %v1847
        %v2199 = vunpack.c.h.b16 %v1847
        %v2200 = vunpack.c.l.b16 %v1848
        %v2201 = vunpack.c.h.b16 %v1848
        %v2202 = vunpack.c.l.b16 %v1849
        %v2203 = vunpack.c.h.b16 %v1849
        %v2204 = vunpack.c.l.b16 %v1850
        %v2205 = vunpack.c.h.b16 %v1850
        %v2206 = vunpack.c.l.b16 %v1851
        %v2207 = vunpack.c.h.b16 %v1851
        %v2208 = vunpack.c.l.b16 %v1852
        %v2209 = vunpack.c.h.b16 %v1852
        %v2210 = vunpack.c.l.b16 %v1853
        %v2211 = vunpack.c.h.b16 %v1853
        %v2212 = vunpack.c.l.b16 %v1854
        %v2213 = vunpack.c.h.b16 %v1854
        %v2214 = vunpack.c.l.b16 %v1855
        %v2215 = vunpack.c.h.b16 %v1855
        %v2216 = vunpack.c.l.b16 %v1856
        %v2217 = vunpack.c.h.b16 %v1856
        %v2218 = vunpack.c.l.b16 %v1857
        %v2219 = vunpack.c.h.b16 %v1857
        %v2220 = vunpack.c.l.b16 %v1858
        %v2221 = vunpack.c.h.b16 %v1858
        %v2222 = vunpack.c.l.b16 %v1859
        %v2223 = vunpack.c.h.b16 %v1859
        %v2224 = vunpack.c.l.b16 %v1860
        %v2225 = vunpack.c.h.b16 %v1860
        %v2226 = vunpack.c.l.b16 %v1861
        %v2227 = vunpack.c.h.b16 %v1861
        %v2228 = vunpack.c.l.b16 %v1862
        %v2229 = vunpack.c.h.b16 %v1862
        %v2230 = vunpack.c.l.b16 %v1863
        %v2231 = vunpack.c.h.b16 %v1863
        %v2232 = vunpack.c.l.b16 %v1864
        %v2233 = vunpack.c.h.b16 %v1864
        %v2234 = vunpack.c.l.b16 %v1865
        %v2235 = vunpack.c.h.b16 %v1865
        %v2236 = vunpack.c.l.b16 %v1866
        %v2237 = vunpack.c.h.b16 %v1866
        %v2238 = vunpack.c.l.b16 %v1867
        %v2239 = vunpack.c.h.b16 %v1867
        %v2240 = vunpack.c.l.b16 %v1868
        %v2241 = vunpack.c.h.b16 %v1868
        %v2242 = vunpack.c.l.b16 %v1869
        %v2243 = vunpack.c.h.b16 %v1869
        %v2244 = vunpack.c.l.b16 %v1870
        %v2245 = vunpack.c.h.b16 %v1870
        %v2246 = vunpack.c.l.b16 %v1871
        %v2247 = vunpack.c.h.b16 %v1871
        %v2248 = vunpack.c.l.b16 %v1872
        %v2249 = vunpack.c.h.b16 %v1872
        %v2250 = vunpack.c.l.b16 %v1873
        %v2251 = vunpack.c.h.b16 %v1873
        %v2252 = vunpack.c.l.b16 %v1874
        %v2253 = vunpack.c.h.b16 %v1874
        %v2254 = vunpack.c.l.b16 %v1875
        %v2255 = vunpack.c.h.b16 %v1875
        %v2256 = vunpack.c.l.b16 %v1876
        %v2257 = vunpack.c.h.b16 %v1876
        %v2258 = vunpack.c.l.b16 %v1877
        %v2259 = vunpack.c.h.b16 %v1877
        %v2260 = vunpack.c.l.b16 %v1878
        %v2261 = vunpack.c.h.b16 %v1878
        %v2262 = vunpack.c.l.b16 %v1879
        %v2263 = vunpack.c.h.b16 %v1879
        %v2264 = vunpack.c.l.b16 %v1880
        %v2265 = vunpack.c.h.b16 %v1880
        %v2266 = vunpack.c.l.b16 %v1881
        %v2267 = vunpack.c.h.b16 %v1881
        %v2268 = vunpack.c.l.b16 %v1882
        %v2269 = vunpack.c.h.b16 %v1882
        %v2270 = vunpack.c.l.b16 %v1883
        %v2271 = vunpack.c.h.b16 %v1883
        %v2272 = vunpack.c.l.b16 %v1884
        %v2273 = vunpack.c.h.b16 %v1884
        %v2274 = vunpack.c.l.b16 %v1885
        %v2275 = vunpack.c.h.b16 %v1885
        %v2276 = vunpack.c.l.b16 %v1886
        %v2277 = vunpack.c.h.b16 %v1886
        %v2278 = vunpack.c.l.b16 %v1887
        %v2279 = vunpack.c.h.b16 %v1887
        %v2280 = vunpack.c.l.b16 %v1888
        %v2281 = vunpack.c.h.b16 %v1888
        %v2282 = vunpack.c.l.b16 %v1889
        %v2283 = vunpack.c.h.b16 %v1889
        %v2284 = vpack.c.b16 %v2032, %v2028
        %v2285 = vpack.c.b16 %v2033, %v2029
        %v2286 = vpack.c.b16 %v2034, %v2030
        %v2287 = vpack.c.b16 %v2035, %v2031
        %v2288 = vpack.c.b16 %v2040, %v2036
        %v2289 = vpack.c.b16 %v2041, %v2037
        %v2290 = vpack.c.b16 %v2042, %v2038
        %v2291 = vpack.c.b16 %v2043, %v2039
        %v2292 = vpack.c.b16 %v2048, %v2044
        %v2293 = vpack.c.b16 %v2049, %v2045
        %v2294 = vpack.c.b16 %v2050, %v2046
        %v2295 = vpack.c.b16 %v2051, %v2047
        %v2296 = vpack.c.b16 %v2056, %v2052
        %v2297 = vpack.c.b16 %v2057, %v2053
        %v2298 = vpack.c.b16 %v2058, %v2054
        %v2299 = vpack.c.b16 %v2059, %v2055
        %v2300 = vpack.c.b16 %v2064, %v2060
        %v2301 = vpack.c.b16 %v2065, %v2061
        %v2302 = vpack.c.b16 %v2066, %v2062
        %v2303 = vpack.c.b16 %v2067, %v2063
        %v2304 = vpack.c.b16 %v2072, %v2068
        %v2305 = vpack.c.b16 %v2073, %v2069
        %v2306 = vpack.c.b16 %v2074, %v2070
        %v2307 = vpack.c.b16 %v2075, %v2071
        %v2308 = vpack.c.b16 %v2080, %v2076
        %v2309 = vpack.c.b16 %v2081, %v2077
        %v2310 = vpack.c.b16 %v2082, %v2078
        %v2311 = vpack.c.b16 %v2083, %v2079
        %v2312 = vpack.c.b16 %v2088, %v2084
        %v2313 = vpack.c.b16 %v2089, %v2085
        %v2314 = vpack.c.b16 %v2090, %v2086
        %v2315 = vpack.c.b16 %v2091, %v2087
        %v2316 = vpack.c.b16 %v2096, %v2092
        %v2317 = vpack.c.b16 %v2097, %v2093
        %v2318 = vpack.c.b16 %v2098, %v2094
        %v2319 = vpack.c.b16 %v2099, %v2095
        %v2320 = vpack.c.b16 %v2104, %v2100
        %v2321 = vpack.c.b16 %v2105, %v2101
        %v2322 = vpack.c.b16 %v2106, %v2102
        %v2323 = vpack.c.b16 %v2107, %v2103
        %v2324 = vpack.c.b16 %v2112, %v2108
        %v2325 = vpack.c.b16 %v2113, %v2109
        %v2326 = vpack.c.b16 %v2114, %v2110
        %v2327 = vpack.c.b16 %v2115, %v2111
        %v2328 = vpack.c.b16 %v2120, %v2116
        %v2329 = vpack.c.b16 %v2121, %v2117
        %v2330 = vpack.c.b16 %v2122, %v2118
        %v2331 = vpack.c.b16 %v2123, %v2119
        %v2332 = vpack.c.b16 %v2128, %v2124
        %v2333 = vpack.c.b16 %v2129, %v2125
        %v2334 = vpack.c.b16 %v2130, %v2126
        %v2335 = vpack.c.b16 %v2131, %v2127
        %v2336 = vpack.c.b16 %v2136, %v2132
        %v2337 = vpack.c.b16 %v2137, %v2133
        %v2338 = vpack.c.b16 %v2138, %v2134
        %v2339 = vpack.c.b16 %v2139, %v2135
        %v2340 = vpack.c.b16 %v2144, %v2140
        %v2341 = vpack.c.b16 %v2145, %v2141
        %v2342 = vpack.c.b16 %v2146, %v2142
        %v2343 = vpack.c.b16 %v2147, %v2143
        %v2344 = vpack.c.b16 %v2152, %v2148
        %v2345 = vpack.c.b16 %v2153, %v2149
        %v2346 = vpack.c.b16 %v2154, %v2150
        %v2347 = vpack.c.b16 %v2155, %v2151
        %v2348 = vpack.c.b16 %v2160, %v2156
        %v2349 = vpack.c.b16 %v2161, %v2157
        %v2350 = vpack.c.b16 %v2162, %v2158
        %v2351 = vpack.c.b16 %v2163, %v2159
        %v2352 = vpack.c.b16 %v2168, %v2164
        %v2353 = vpack.c.b16 %v2169, %v2165
        %v2354 = vpack.c.b16 %v2170, %v2166
        %v2355 = vpack.c.b16 %v2171, %v2167
        %v2356 = vpack.c.b16 %v2176, %v2172
        %v2357 = vpack.c.b16 %v2177, %v2173
        %v2358 = vpack.c.b16 %v2178, %v2174
        %v2359 = vpack.c.b16 %v2179, %v2175
        %v2360 = vpack.c.b16 %v2184, %v2180
        %v2361 = vpack.c.b16 %v2185, %v2181
        %v2362 = vpack.c.b16 %v2186, %v2182
        %v2363 = vpack.c.b16 %v2187, %v2183
        %v2364 = vpack.c.b16 %v2192, %v2188
        %v2365 = vpack.c.b16 %v2193, %v2189
        %v2366 = vpack.c.b16 %v2194, %v2190
        %v2367 = vpack.c.b16 %v2195, %v2191
        %v2368 = vpack.c.b16 %v2200, %v2196
        %v2369 = vpack.c.b16 %v2201, %v2197
        %v2370 = vpack.c.b16 %v2202, %v2198
        %v2371 = vpack.c.b16 %v2203, %v2199
        %v2372 = vpack.c.b16 %v2208, %v2204
        %v2373 = vpack.c.b16 %v2209, %v2205
        %v2374 = vpack.c.b16 %v2210, %v2206
        %v2375 = vpack.c.b16 %v2211, %v2207
        %v2376 = vpack.c.b16 %v2216, %v2212
        %v2377 = vpack.c.b16 %v2217, %v2213
        %v2378 = vpack.c.b16 %v2218, %v2214
        %v2379 = vpack.c.b16 %v2219, %v2215
        %v2380 = vpack.c.b16 %v2224, %v2220
        %v2381 = vpack.c.b16 %v2225, %v2221
        %v2382 = vpack.c.b16 %v2226, %v2222
        %v2383 = vpack.c.b16 %v2227, %v2223
        %v2384 = vpack.c.b16 %v2232, %v2228
        %v2385 = vpack.c.b16 %v2233, %v2229
        %v2386 = vpack.c.b16 %v2234, %v2230
        %v2387 = vpack.c.b16 %v2235, %v2231
        %v2388 = vpack.c.b16 %v2240, %v2236
        %v2389 = vpack.c.b16 %v2241, %v2237
        %v2390 = vpack.c.b16 %v2242, %v2238
        %v2391 = vpack.c.b16 %v2243, %v2239
        %v2392 = vpack.c.b16 %v2248, %v2244
        %v2393 = vpack.c.b16 %v2249, %v2245
        %v2394 = vpack.c.b16 %v2250, %v2246
        %v2395 = vpack.c.b16 %v2251, %v2247
        %v2396 = vpack.c.b16 %v2256, %v2252
        %v2397 = vpack.c.b16 %v2257, %v2253
        %v2398 = vpack.c.b16 %v2258, %v2254
        %v2399 = vpack.c.b16 %v2259, %v2255
        %v2400 = vpack.c.b16 %v2264, %v2260
        %v2401 = vpack.c.b16 %v2265, %v2261
        %v2402 = vpack.c.b16 %v2266, %v2262
        %v2403 = vpack.c.b16 %v2267, %v2263
        %v2404 = vpack.c.b16 %v2272, %v2268
        %v2405 = vpack.c.b16 %v2273, %v2269
        %v2406 = vpack.c.b16 %v2274, %v2270
        %v2407 = vpack.c.b16 %v2275, %v2271
        %v2408 = vpack.c.b16 %v2280, %v2276
        %v2409 = vpack.c.b16 %v2281, %v2277
        %v2410 = vpack.c.b16 %v2282, %v2278
        %v2411 = vpack.c.b16 %v2283, %v2279
        %2540 = vmatpush.bf16.msra.mxu0 %v2312
        %2541 = vmatpush.bf16.msra.mxu0 %v2308
        %2542 = vmatpush.bf16.msra.mxu0 %v2304
        %2543 = vmatpush.bf16.msra.mxu0 %v2300
        %2544 = vmatpush.bf16.msra.mxu0 %v2296
        %2545 = vmatpush.bf16.msra.mxu0 %v2292
        %2546 = vmatpush.bf16.msra.mxu0 %v2288
        %2547 = vmatpush.bf16.msra.mxu0 %v2284
        %2548 = vmatmul.bf16.gmra.mxu0 %v1750
        %v2549 = vpop.f32.mrf.mxu0
        %v2550 = vadd.f32 %v1892, %v2549
        %v2551 = vpop.f32.mrf.mxu0
        %v2552 = vadd.f32 %v1892, %v2551
        %2553 = vmatmul.bf16.gmra.mxu0 %v1754
        %v2554 = vpop.f32.mrf.mxu0
        %v2555 = vadd.f32 %v1892, %v2554
        %v2556 = vpop.f32.mrf.mxu0
        %v2557 = vadd.f32 %v1892, %v2556
        %2558 = vmatmul.bf16.gmra.mxu0 %v1758
        %v2559 = vpop.f32.mrf.mxu0
        %v2560 = vadd.f32 %v1892, %v2559
        %v2561 = vpop.f32.mrf.mxu0
        %2562 = vdwg.mxu0
        %2563 = vmatpush.bf16.msra.mxu0 %v2344
        %2564 = vmatpush.bf16.msra.mxu0 %v2340
        %2565 = vmatpush.bf16.msra.mxu0 %v2336
        %2566 = vmatpush.bf16.msra.mxu0 %v2332
        %2567 = vmatpush.bf16.msra.mxu0 %v2328
        %2568 = vmatpush.bf16.msra.mxu0 %v2324
        %2569 = vmatpush.bf16.msra.mxu0 %v2320
        %2570 = vmatpush.bf16.msra.mxu0 %v2316
        %2571 = vmatmul.bf16.gmra.mxu0 %v1751
        %v2572 = vpop.f32.mrf.mxu0
        %v2573 = vadd.f32 %v2550, %v2572
        %v2574 = vpop.f32.mrf.mxu0
        %v2575 = vadd.f32 %v2552, %v2574
        %2576 = vmatmul.bf16.gmra.mxu0 %v1755
        %v2577 = vpop.f32.mrf.mxu0
        %v2578 = vadd.f32 %v2555, %v2577
        %v2579 = vpop.f32.mrf.mxu0
        %v2580 = vadd.f32 %v2557, %v2579
        %2581 = vmatmul.bf16.gmra.mxu0 %v1759
        %v2582 = vpop.f32.mrf.mxu0
        %v2583 = vadd.f32 %v2560, %v2582
        %v2584 = vpop.f32.mrf.mxu0
        %2585 = vdwg.mxu0
        %2586 = vmatpush.bf16.msra.mxu0 %v2376
        %2587 = vmatpush.bf16.msra.mxu0 %v2372
        %2588 = vmatpush.bf16.msra.mxu0 %v2368
        %2589 = vmatpush.bf16.msra.mxu0 %v2364
        %2590 = vmatpush.bf16.msra.mxu0 %v2360
        %2591 = vmatpush.bf16.msra.mxu0 %v2356
        %2592 = vmatpush.bf16.msra.mxu0 %v2352
        %2593 = vmatpush.bf16.msra.mxu0 %v2348
        %2594 = vmatmul.bf16.gmra.mxu0 %v1752
        %v2595 = vpop.f32.mrf.mxu0
        %v2596 = vadd.f32 %v2573, %v2595
        %v2597 = vpop.f32.mrf.mxu0
        %v2598 = vadd.f32 %v2575, %v2597
        %2599 = vmatmul.bf16.gmra.mxu0 %v1756
        %v2600 = vpop.f32.mrf.mxu0
        %v2601 = vadd.f32 %v2578, %v2600
        %v2602 = vpop.f32.mrf.mxu0
        %v2603 = vadd.f32 %v2580, %v2602
        %2604 = vmatmul.bf16.gmra.mxu0 %v1760
        %v2605 = vpop.f32.mrf.mxu0
        %v2606 = vadd.f32 %v2583, %v2605
        %v2607 = vpop.f32.mrf.mxu0
        %2608 = vdwg.mxu0
        %2609 = vmatpush.bf16.msra.mxu0 %v2408
        %2610 = vmatpush.bf16.msra.mxu0 %v2404
        %2611 = vmatpush.bf16.msra.mxu0 %v2400
        %2612 = vmatpush.bf16.msra.mxu0 %v2396
        %2613 = vmatpush.bf16.msra.mxu0 %v2392
        %2614 = vmatpush.bf16.msra.mxu0 %v2388
        %2615 = vmatpush.bf16.msra.mxu0 %v2384
        %2616 = vmatpush.bf16.msra.mxu0 %v2380
        %2617 = vmatmul.bf16.gmra.mxu0 %v1753
        %v2618 = vpop.f32.mrf.mxu0
        %v2619 = vadd.f32 %v2596, %v2618
        %v2620 = vpop.f32.mrf.mxu0
        %v2621 = vadd.f32 %v2598, %v2620
        %2622 = vmatmul.bf16.gmra.mxu0 %v1757
        %v2623 = vpop.f32.mrf.mxu0
        %v2624 = vadd.f32 %v2601, %v2623
        %v2625 = vpop.f32.mrf.mxu0
        %v2626 = vadd.f32 %v2603, %v2625
        %2627 = vmatmul.bf16.gmra.mxu0 %v1761
        %v2628 = vpop.f32.mrf.mxu0
        %v2629 = vadd.f32 %v2606, %v2628
        %v2630 = vpop.f32.mrf.mxu0
        %2631 = vdwg.mxu0
        %2632 = vmatpush.bf16.msra.mxu0 %v2313
        %2633 = vmatpush.bf16.msra.mxu0 %v2309
        %2634 = vmatpush.bf16.msra.mxu0 %v2305
        %2635 = vmatpush.bf16.msra.mxu0 %v2301
        %2636 = vmatpush.bf16.msra.mxu0 %v2297
        %2637 = vmatpush.bf16.msra.mxu0 %v2293
        %2638 = vmatpush.bf16.msra.mxu0 %v2289
        %2639 = vmatpush.bf16.msra.mxu0 %v2285
        %2640 = vmatmul.bf16.gmra.mxu0 %v1750
        %v2641 = vpop.f32.mrf.mxu0
        %v2642 = vadd.f32 %v1893, %v2641
        %v2643 = vpop.f32.mrf.mxu0
        %v2644 = vadd.f32 %v1893, %v2643
        %2645 = vmatmul.bf16.gmra.mxu0 %v1754
        %v2646 = vpop.f32.mrf.mxu0
        %v2647 = vadd.f32 %v1893, %v2646
        %v2648 = vpop.f32.mrf.mxu0
        %v2649 = vadd.f32 %v1893, %v2648
        %2650 = vmatmul.bf16.gmra.mxu0 %v1758
        %v2651 = vpop.f32.mrf.mxu0
        %v2652 = vadd.f32 %v1893, %v2651
        %v2653 = vpop.f32.mrf.mxu0
        %2654 = vdwg.mxu0
        %2655 = vmatpush.bf16.msra.mxu0 %v2345
        %2656 = vmatpush.bf16.msra.mxu0 %v2341
        %2657 = vmatpush.bf16.msra.mxu0 %v2337
        %2658 = vmatpush.bf16.msra.mxu0 %v2333
        %2659 = vmatpush.bf16.msra.mxu0 %v2329
        %2660 = vmatpush.bf16.msra.mxu0 %v2325
        %2661 = vmatpush.bf16.msra.mxu0 %v2321
        %2662 = vmatpush.bf16.msra.mxu0 %v2317
        %2663 = vmatmul.bf16.gmra.mxu0 %v1751
        %v2664 = vpop.f32.mrf.mxu0
        %v2665 = vadd.f32 %v2642, %v2664
        %v2666 = vpop.f32.mrf.mxu0
        %v2667 = vadd.f32 %v2644, %v2666
        %2668 = vmatmul.bf16.gmra.mxu0 %v1755
        %v2669 = vpop.f32.mrf.mxu0
        %v2670 = vadd.f32 %v2647, %v2669
        %v2671 = vpop.f32.mrf.mxu0
        %v2672 = vadd.f32 %v2649, %v2671
        %2673 = vmatmul.bf16.gmra.mxu0 %v1759
        %v2674 = vpop.f32.mrf.mxu0
        %v2675 = vadd.f32 %v2652, %v2674
        %v2676 = vpop.f32.mrf.mxu0
        %2677 = vdwg.mxu0
        %2678 = vmatpush.bf16.msra.mxu0 %v2377
        %2679 = vmatpush.bf16.msra.mxu0 %v2373
        %2680 = vmatpush.bf16.msra.mxu0 %v2369
        %2681 = vmatpush.bf16.msra.mxu0 %v2365
        %2682 = vmatpush.bf16.msra.mxu0 %v2361
        %2683 = vmatpush.bf16.msra.mxu0 %v2357
        %2684 = vmatpush.bf16.msra.mxu0 %v2353
        %2685 = vmatpush.bf16.msra.mxu0 %v2349
        %2686 = vmatmul.bf16.gmra.mxu0 %v1752
        %v2687 = vpop.f32.mrf.mxu0
        %v2688 = vadd.f32 %v2665, %v2687
        %v2689 = vpop.f32.mrf.mxu0
        %v2690 = vadd.f32 %v2667, %v2689
        %2691 = vmatmul.bf16.gmra.mxu0 %v1756
        %v2692 = vpop.f32.mrf.mxu0
        %v2693 = vadd.f32 %v2670, %v2692
        %v2694 = vpop.f32.mrf.mxu0
        %v2695 = vadd.f32 %v2672, %v2694
        %2696 = vmatmul.bf16.gmra.mxu0 %v1760
        %v2697 = vpop.f32.mrf.mxu0
        %v2698 = vadd.f32 %v2675, %v2697
        %v2699 = vpop.f32.mrf.mxu0
        %2700 = vdwg.mxu0
        %2701 = vmatpush.bf16.msra.mxu0 %v2409
        %2702 = vmatpush.bf16.msra.mxu0 %v2405
        %2703 = vmatpush.bf16.msra.mxu0 %v2401
        %2704 = vmatpush.bf16.msra.mxu0 %v2397
        %2705 = vmatpush.bf16.msra.mxu0 %v2393
        %2706 = vmatpush.bf16.msra.mxu0 %v2389
        %2707 = vmatpush.bf16.msra.mxu0 %v2385
        %2708 = vmatpush.bf16.msra.mxu0 %v2381
        %2709 = vmatmul.bf16.gmra.mxu0 %v1753
        %v2710 = vpop.f32.mrf.mxu0
        %v2711 = vadd.f32 %v2688, %v2710
        %v2712 = vpop.f32.mrf.mxu0
        %v2713 = vadd.f32 %v2690, %v2712
        %2714 = vmatmul.bf16.gmra.mxu0 %v1757
        %v2715 = vpop.f32.mrf.mxu0
        %v2716 = vadd.f32 %v2693, %v2715
        %v2717 = vpop.f32.mrf.mxu0
        %v2718 = vadd.f32 %v2695, %v2717
        %2719 = vmatmul.bf16.gmra.mxu0 %v1761
        %v2720 = vpop.f32.mrf.mxu0
        %v2721 = vadd.f32 %v2698, %v2720
        %v2722 = vpop.f32.mrf.mxu0
        %2723 = vdwg.mxu0
        %2724 = vmatpush.bf16.msra.mxu0 %v2314
        %2725 = vmatpush.bf16.msra.mxu0 %v2310
        %2726 = vmatpush.bf16.msra.mxu0 %v2306
        %2727 = vmatpush.bf16.msra.mxu0 %v2302
        %2728 = vmatpush.bf16.msra.mxu0 %v2298
        %2729 = vmatpush.bf16.msra.mxu0 %v2294
        %2730 = vmatpush.bf16.msra.mxu0 %v2290
        %2731 = vmatpush.bf16.msra.mxu0 %v2286
        %2732 = vmatmul.bf16.gmra.mxu0 %v1750
        %v2733 = vpop.f32.mrf.mxu0
        %v2734 = vadd.f32 %v1894, %v2733
        %v2735 = vpop.f32.mrf.mxu0
        %v2736 = vadd.f32 %v1894, %v2735
        %2737 = vmatmul.bf16.gmra.mxu0 %v1754
        %v2738 = vpop.f32.mrf.mxu0
        %v2739 = vadd.f32 %v1894, %v2738
        %v2740 = vpop.f32.mrf.mxu0
        %v2741 = vadd.f32 %v1894, %v2740
        %2742 = vmatmul.bf16.gmra.mxu0 %v1758
        %v2743 = vpop.f32.mrf.mxu0
        %v2744 = vadd.f32 %v1894, %v2743
        %v2745 = vpop.f32.mrf.mxu0
        %2746 = vdwg.mxu0
        %2747 = vmatpush.bf16.msra.mxu0 %v2346
        %2748 = vmatpush.bf16.msra.mxu0 %v2342
        %2749 = vmatpush.bf16.msra.mxu0 %v2338
        %2750 = vmatpush.bf16.msra.mxu0 %v2334
        %2751 = vmatpush.bf16.msra.mxu0 %v2330
        %2752 = vmatpush.bf16.msra.mxu0 %v2326
        %2753 = vmatpush.bf16.msra.mxu0 %v2322
        %2754 = vmatpush.bf16.msra.mxu0 %v2318
        %2755 = vmatmul.bf16.gmra.mxu0 %v1751
        %v2756 = vpop.f32.mrf.mxu0
        %v2757 = vadd.f32 %v2734, %v2756
        %v2758 = vpop.f32.mrf.mxu0
        %v2759 = vadd.f32 %v2736, %v2758
        %2760 = vmatmul.bf16.gmra.mxu0 %v1755
        %v2761 = vpop.f32.mrf.mxu0
        %v2762 = vadd.f32 %v2739, %v2761
        %v2763 = vpop.f32.mrf.mxu0
        %v2764 = vadd.f32 %v2741, %v2763
        %2765 = vmatmul.bf16.gmra.mxu0 %v1759
        %v2766 = vpop.f32.mrf.mxu0
        %v2767 = vadd.f32 %v2744, %v2766
        %v2768 = vpop.f32.mrf.mxu0
        %2769 = vdwg.mxu0
        %2770 = vmatpush.bf16.msra.mxu0 %v2378
        %2771 = vmatpush.bf16.msra.mxu0 %v2374
        %2772 = vmatpush.bf16.msra.mxu0 %v2370
        %2773 = vmatpush.bf16.msra.mxu0 %v2366
        %2774 = vmatpush.bf16.msra.mxu0 %v2362
        %2775 = vmatpush.bf16.msra.mxu0 %v2358
        %2776 = vmatpush.bf16.msra.mxu0 %v2354
        %2777 = vmatpush.bf16.msra.mxu0 %v2350
        %2778 = vmatmul.bf16.gmra.mxu0 %v1752
        %v2779 = vpop.f32.mrf.mxu0
        %v2780 = vadd.f32 %v2757, %v2779
        %v2781 = vpop.f32.mrf.mxu0
        %v2782 = vadd.f32 %v2759, %v2781
        %2783 = vmatmul.bf16.gmra.mxu0 %v1756
        %v2784 = vpop.f32.mrf.mxu0
        %v2785 = vadd.f32 %v2762, %v2784
        %v2786 = vpop.f32.mrf.mxu0
        %v2787 = vadd.f32 %v2764, %v2786
        %2788 = vmatmul.bf16.gmra.mxu0 %v1760
        %v2789 = vpop.f32.mrf.mxu0
        %v2790 = vadd.f32 %v2767, %v2789
        %v2791 = vpop.f32.mrf.mxu0
        %2792 = vdwg.mxu0
        %2793 = vmatpush.bf16.msra.mxu0 %v2410
        %2794 = vmatpush.bf16.msra.mxu0 %v2406
        %2795 = vmatpush.bf16.msra.mxu0 %v2402
        %2796 = vmatpush.bf16.msra.mxu0 %v2398
        %2797 = vmatpush.bf16.msra.mxu0 %v2394
        %2798 = vmatpush.bf16.msra.mxu0 %v2390
        %2799 = vmatpush.bf16.msra.mxu0 %v2386
        %2800 = vmatpush.bf16.msra.mxu0 %v2382
        %2801 = vmatmul.bf16.gmra.mxu0 %v1753
        %v2802 = vpop.f32.mrf.mxu0
        %v2803 = vadd.f32 %v2780, %v2802
        %v2804 = vpop.f32.mrf.mxu0
        %v2805 = vadd.f32 %v2782, %v2804
        %2806 = vmatmul.bf16.gmra.mxu0 %v1757
        %v2807 = vpop.f32.mrf.mxu0
        %v2808 = vadd.f32 %v2785, %v2807
        %v2809 = vpop.f32.mrf.mxu0
        %v2810 = vadd.f32 %v2787, %v2809
        %2811 = vmatmul.bf16.gmra.mxu0 %v1761
        %v2812 = vpop.f32.mrf.mxu0
        %v2813 = vadd.f32 %v2790, %v2812
        %v2814 = vpop.f32.mrf.mxu0
        %2815 = vdwg.mxu0
        %2816 = vmatpush.bf16.msra.mxu0 %v2315
        %2817 = vmatpush.bf16.msra.mxu0 %v2311
        %2818 = vmatpush.bf16.msra.mxu0 %v2307
        %2819 = vmatpush.bf16.msra.mxu0 %v2303
        %2820 = vmatpush.bf16.msra.mxu0 %v2299
        %2821 = vmatpush.bf16.msra.mxu0 %v2295
        %2822 = vmatpush.bf16.msra.mxu0 %v2291
        %2823 = vmatpush.bf16.msra.mxu0 %v2287
        %2824 = vmatmul.bf16.gmra.mxu0 %v1750
        %v2825 = vpop.f32.mrf.mxu0
        %v2826 = vadd.f32 %v1895, %v2825
        %v2827 = vpop.f32.mrf.mxu0
        %v2828 = vadd.f32 %v1895, %v2827
        %2829 = vmatmul.bf16.gmra.mxu0 %v1754
        %v2830 = vpop.f32.mrf.mxu0
        %v2831 = vadd.f32 %v1895, %v2830
        %v2832 = vpop.f32.mrf.mxu0
        %v2833 = vadd.f32 %v1895, %v2832
        %2834 = vmatmul.bf16.gmra.mxu0 %v1758
        %v2835 = vpop.f32.mrf.mxu0
        %v2836 = vadd.f32 %v1895, %v2835
        %v2837 = vpop.f32.mrf.mxu0
        %2838 = vdwg.mxu0
        %2839 = vmatpush.bf16.msra.mxu0 %v2347
        %2840 = vmatpush.bf16.msra.mxu0 %v2343
        %2841 = vmatpush.bf16.msra.mxu0 %v2339
        %2842 = vmatpush.bf16.msra.mxu0 %v2335
        %2843 = vmatpush.bf16.msra.mxu0 %v2331
        %2844 = vmatpush.bf16.msra.mxu0 %v2327
        %2845 = vmatpush.bf16.msra.mxu0 %v2323
        %2846 = vmatpush.bf16.msra.mxu0 %v2319
        %2847 = vmatmul.bf16.gmra.mxu0 %v1751
        %v2848 = vpop.f32.mrf.mxu0
        %v2849 = vadd.f32 %v2826, %v2848
        %v2850 = vpop.f32.mrf.mxu0
        %v2851 = vadd.f32 %v2828, %v2850
        %2852 = vmatmul.bf16.gmra.mxu0 %v1755
        %v2853 = vpop.f32.mrf.mxu0
        %v2854 = vadd.f32 %v2831, %v2853
        %v2855 = vpop.f32.mrf.mxu0
        %v2856 = vadd.f32 %v2833, %v2855
        %2857 = vmatmul.bf16.gmra.mxu0 %v1759
        %v2858 = vpop.f32.mrf.mxu0
        %v2859 = vadd.f32 %v2836, %v2858
        %v2860 = vpop.f32.mrf.mxu0
        %2861 = vdwg.mxu0
        %2862 = vmatpush.bf16.msra.mxu0 %v2379
        %2863 = vmatpush.bf16.msra.mxu0 %v2375
        %2864 = vmatpush.bf16.msra.mxu0 %v2371
        %2865 = vmatpush.bf16.msra.mxu0 %v2367
        %2866 = vmatpush.bf16.msra.mxu0 %v2363
        %2867 = vmatpush.bf16.msra.mxu0 %v2359
        %2868 = vmatpush.bf16.msra.mxu0 %v2355
        %2869 = vmatpush.bf16.msra.mxu0 %v2351
        %2870 = vmatmul.bf16.gmra.mxu0 %v1752
        %v2871 = vpop.f32.mrf.mxu0
        %v2872 = vadd.f32 %v2849, %v2871
        %v2873 = vpop.f32.mrf.mxu0
        %v2874 = vadd.f32 %v2851, %v2873
        %2875 = vmatmul.bf16.gmra.mxu0 %v1756
        %v2876 = vpop.f32.mrf.mxu0
        %v2877 = vadd.f32 %v2854, %v2876
        %v2878 = vpop.f32.mrf.mxu0
        %v2879 = vadd.f32 %v2856, %v2878
        %2880 = vmatmul.bf16.gmra.mxu0 %v1760
        %v2881 = vpop.f32.mrf.mxu0
        %v2882 = vadd.f32 %v2859, %v2881
        %v2883 = vpop.f32.mrf.mxu0
        %2884 = vdwg.mxu0
        %2885 = vmatpush.bf16.msra.mxu0 %v2411
        %2886 = vmatpush.bf16.msra.mxu0 %v2407
        %2887 = vmatpush.bf16.msra.mxu0 %v2403
        %2888 = vmatpush.bf16.msra.mxu0 %v2399
        %2889 = vmatpush.bf16.msra.mxu0 %v2395
        %2890 = vmatpush.bf16.msra.mxu0 %v2391
        %2891 = vmatpush.bf16.msra.mxu0 %v2387
        %2892 = vmatpush.bf16.msra.mxu0 %v2383
        %2893 = vmatmul.bf16.gmra.mxu0 %v1753
        %v2894 = vpop.f32.mrf.mxu0
        %v2895 = vadd.f32 %v2872, %v2894
        %v2896 = vpop.f32.mrf.mxu0
        %v2897 = vadd.f32 %v2874, %v2896
        %2898 = vmatmul.bf16.gmra.mxu0 %v1757
        %v2899 = vpop.f32.mrf.mxu0
        %v2900 = vadd.f32 %v2877, %v2899
        %v2901 = vpop.f32.mrf.mxu0
        %v2902 = vadd.f32 %v2879, %v2901
        %2903 = vmatmul.bf16.gmra.mxu0 %v1761
        %v2904 = vpop.f32.mrf.mxu0
        %v2905 = vadd.f32 %v2882, %v2904
        %v2906 = vpop.f32.mrf.mxu0
        %2907 = vdwg.mxu0
        %v2908 = vmax.f32 %v2619, 0.0
        %v2909 = vmax.f32 %v2711, 0.0
        %v2910 = vmax.f32 %v2803, 0.0
        %v2911 = vmax.f32 %v2895, 0.0
        %v2912 = vmax.f32 %v2621, 0.0
        %v2913 = vmax.f32 %v2713, 0.0
        %v2914 = vmax.f32 %v2805, 0.0
        %v2915 = vmax.f32 %v2897, 0.0
        %v2916 = vmax.f32 %v2624, 0.0
        %v2917 = vmax.f32 %v2716, 0.0
        %v2918 = vmax.f32 %v2808, 0.0
        %v2919 = vmax.f32 %v2900, 0.0
        %v2920 = vmax.f32 %v2626, 0.0
        %v2921 = vmax.f32 %v2718, 0.0
        %v2922 = vmax.f32 %v2810, 0.0
        %v2923 = vmax.f32 %v2902, 0.0
        %v2924 = vmax.f32 %v2629, 0.0
        %v2925 = vmax.f32 %v2721, 0.0
        %v2926 = vmax.f32 %v2813, 0.0
        %v2927 = vmax.f32 %v2905, 0.0
        %v2928 = vpack.c.bf16 %v2912, %v2908
        %v2929 = vpack.c.bf16 %v2913, %v2909
        %v2930 = vpack.c.bf16 %v2914, %v2910
        %v2931 = vpack.c.bf16 %v2915, %v2911
        %v2932 = vpack.c.bf16 %v2920, %v2916
        %v2933 = vpack.c.bf16 %v2921, %v2917
        %v2934 = vpack.c.bf16 %v2922, %v2918
        %v2935 = vpack.c.bf16 %v2923, %v2919
        %v2936 = vpack.c.bf16 %v2924, %v2924
        %v2937 = vpack.c.bf16 %v2925, %v2925
        %v2938 = vpack.c.bf16 %v2926, %v2926
        %v2939 = vpack.c.bf16 %v2927, %v2927
        %v2940 = vld [vmem:[#allocation6] sm:$0xf]
        %v2941 = vld [vmem:[#allocation6 + $0x4] sm:$0xf]
        %v2942 = vld [vmem:[#allocation6 + $0x8] sm:$0xf]
        %v2943 = vld [vmem:[#allocation6 + $0xc] sm:$0xf]
        %v2944 = vld [vmem:[#allocation6 + $0x10] sm:$0xf]
        %v2945 = vld [vmem:[#allocation6 + $0x14] sm:$0xf]
        %v2946 = vld [vmem:[#allocation6 + $0x18] sm:$0xf]
        %v2947 = vld [vmem:[#allocation6 + $0x1c] sm:$0xf]
        %v2948 = vld [vmem:[#allocation6 + $0x20] sm:$0xf]
        %v2949 = vld [vmem:[#allocation6 + $0x24] sm:$0xf]
        %v2950 = vld [vmem:[#allocation6 + $0x28] sm:$0xf]
        %v2951 = vld [vmem:[#allocation6 + $0x2c] sm:$0xf]
        %v2952 = vld [vmem:[#allocation6 + $0x30] sm:$0xf]
        %v2953 = vld [vmem:[#allocation6 + $0x34] sm:$0xf]
        %v2954 = vld [vmem:[#allocation6 + $0x38] sm:$0xf]
        %v2955 = vld [vmem:[#allocation6 + $0x3c] sm:$0xf]
        %v2956 = vld [vmem:[#allocation6 + $0x40] sm:$0xf]
        %v2957 = vld [vmem:[#allocation6 + $0x44] sm:$0xf]
        %v2958 = vld [vmem:[#allocation6 + $0x48] sm:$0xf]
        %v2959 = vld [vmem:[#allocation6 + $0x4c] sm:$0xf]
        %v2960 = vld [vmem:[#allocation6 + $0x50] sm:$0xf]
        %v2961 = vld [vmem:[#allocation6 + $0x54] sm:$0xf]
        %v2962 = vld [vmem:[#allocation6 + $0x58] sm:$0xf]
        %v2963 = vld [vmem:[#allocation6 + $0x5c] sm:$0xf]
        %v2964 = vld [vmem:[#allocation6 + $0x60] sm:$0xf]
        %v2965 = vld [vmem:[#allocation6 + $0x64] sm:$0xf]
        %v2966 = vld [vmem:[#allocation6 + $0x68] sm:$0xf]
        %v2967 = vld [vmem:[#allocation6 + $0x6c] sm:$0xf]
        %v2968 = vld [vmem:[#allocation6 + $0x70] sm:$0xf]
        %v2969 = vld [vmem:[#allocation6 + $0x74] sm:$0xf]
        %v2970 = vld [vmem:[#allocation6 + $0x78] sm:$0xf]
        %v2971 = vld [vmem:[#allocation6 + $0x7c] sm:$0xf]
        %v2972 = vld [vmem:[#allocation6 + $0x80] sm:$0xf]
        %v2973 = vld [vmem:[#allocation6 + $0x84] sm:$0xf]
        %v2974 = vld [vmem:[#allocation6 + $0x88] sm:$0xf]
        %v2975 = vld [vmem:[#allocation6 + $0x8c] sm:$0xf]
        %v2976 = vld [vmem:[#allocation6 + $0x90] sm:$0xf]
        %v2977 = vld [vmem:[#allocation6 + $0x94] sm:$0xf]
        %v2978 = vld [vmem:[#allocation6 + $0x98] sm:$0xf]
        %v2979 = vld [vmem:[#allocation6 + $0x9c] sm:$0xf]
        %v2980 = vld [vmem:[#allocation6 + $0xa0] sm:$0xf]
        %v2981 = vld [vmem:[#allocation6 + $0xa4] sm:$0xf]
        %v2982 = vld [vmem:[#allocation6 + $0xa8] sm:$0xf]
        %v2983 = vld [vmem:[#allocation6 + $0xac] sm:$0xf]
        %v2984 = vld [vmem:[#allocation6 + $0xb0] sm:$0xf]
        %v2985 = vld [vmem:[#allocation6 + $0xb4] sm:$0xf]
        %v2986 = vld [vmem:[#allocation6 + $0xb8] sm:$0xf]
        %v2987 = vld [vmem:[#allocation6 + $0xbc] sm:$0xf]
        %v2988 = vld [vmem:[#allocation6 + $0xc0] sm:$0xf]
        %v2989 = vld [vmem:[#allocation6 + $0xc4] sm:$0xf]
        %v2990 = vld [vmem:[#allocation6 + $0xc8] sm:$0xf]
        %v2991 = vld [vmem:[#allocation6 + $0xcc] sm:$0xf]
        %v2992 = vld [vmem:[#allocation6 + $0xd0] sm:$0xf]
        %v2993 = vld [vmem:[#allocation6 + $0xd4] sm:$0xf]
        %v2994 = vld [vmem:[#allocation6 + $0xd8] sm:$0xf]
        %v2995 = vld [vmem:[#allocation6 + $0xdc] sm:$0xf]
        %v2996 = vld [vmem:[#allocation6 + $0xe0] sm:$0xf]
        %v2997 = vld [vmem:[#allocation6 + $0xe4] sm:$0xf]
        %v2998 = vld [vmem:[#allocation6 + $0xe8] sm:$0xf]
        %v2999 = vld [vmem:[#allocation6 + $0xec] sm:$0xf]
        %v3000 = vld [vmem:[#allocation6 + $0xf0] sm:$0xf]
        %v3001 = vld [vmem:[#allocation6 + $0xf4] sm:$0xf]
        %v3002 = vld [vmem:[#allocation6 + $0xf8] sm:$0xf]
        %v3003 = vld [vmem:[#allocation6 + $0xfc] sm:$0xf]
        %v3004 = vld [vmem:[%s8] sm:$0x1]
        %v3006 = vperm.slane %v3004, 0
        %v3072 = vunpack.c.l.b16 %v2940
        %v3073 = vunpack.c.l.b16 %v2941
        %v3074 = vunpack.c.l.b16 %v2942
        %v3075 = vunpack.c.l.b16 %v2943
        %v3076 = vunpack.c.l.b16 %v2944
        %v3077 = vunpack.c.l.b16 %v2945
        %v3078 = vunpack.c.l.b16 %v2946
        %v3079 = vunpack.c.l.b16 %v2947
        %v3080 = vunpack.c.l.b16 %v2948
        %v3081 = vunpack.c.l.b16 %v2949
        %v3082 = vunpack.c.l.b16 %v2950
        %v3083 = vunpack.c.l.b16 %v2951
        %v3084 = vunpack.c.l.b16 %v2952
        %v3085 = vunpack.c.l.b16 %v2953
        %v3086 = vunpack.c.l.b16 %v2954
        %v3087 = vunpack.c.l.b16 %v2955
        %v3088 = vunpack.c.l.b16 %v2956
        %v3089 = vunpack.c.l.b16 %v2957
        %v3090 = vunpack.c.l.b16 %v2958
        %v3091 = vunpack.c.l.b16 %v2959
        %v3092 = vunpack.c.l.b16 %v2960
        %v3093 = vunpack.c.l.b16 %v2961
        %v3094 = vunpack.c.l.b16 %v2962
        %v3095 = vunpack.c.l.b16 %v2963
        %v3096 = vunpack.c.l.b16 %v2964
        %v3097 = vunpack.c.l.b16 %v2965
        %v3098 = vunpack.c.l.b16 %v2966
        %v3099 = vunpack.c.l.b16 %v2967
        %v3100 = vunpack.c.l.b16 %v2968
        %v3101 = vunpack.c.l.b16 %v2969
        %v3102 = vunpack.c.l.b16 %v2970
        %v3103 = vunpack.c.l.b16 %v2971
        %v3104 = vunpack.c.l.b16 %v2972
        %v3105 = vunpack.c.l.b16 %v2973
        %v3106 = vunpack.c.l.b16 %v2974
        %v3107 = vunpack.c.l.b16 %v2975
        %v3108 = vunpack.c.l.b16 %v2976
        %v3109 = vunpack.c.l.b16 %v2977
        %v3110 = vunpack.c.l.b16 %v2978
        %v3111 = vunpack.c.l.b16 %v2979
        %v3112 = vunpack.c.l.b16 %v2980
        %v3113 = vunpack.c.l.b16 %v2981
        %v3114 = vunpack.c.l.b16 %v2982
        %v3115 = vunpack.c.l.b16 %v2983
        %v3116 = vunpack.c.l.b16 %v2984
        %v3117 = vunpack.c.l.b16 %v2985
        %v3118 = vunpack.c.l.b16 %v2986
        %v3119 = vunpack.c.l.b16 %v2987
        %v3120 = vunpack.c.l.b16 %v2988
        %v3121 = vunpack.c.l.b16 %v2989
        %v3122 = vunpack.c.l.b16 %v2990
        %v3123 = vunpack.c.l.b16 %v2991
        %v3124 = vunpack.c.l.b16 %v2992
        %v3125 = vunpack.c.l.b16 %v2993
        %v3126 = vunpack.c.l.b16 %v2994
        %v3127 = vunpack.c.l.b16 %v2995
        %v3128 = vunpack.c.l.b16 %v2996
        %v3129 = vunpack.c.l.b16 %v2997
        %v3130 = vunpack.c.l.b16 %v2998
        %v3131 = vunpack.c.l.b16 %v2999
        %v3132 = vunpack.c.l.b16 %v3000
        %v3133 = vunpack.c.l.b16 %v3001
        %v3134 = vunpack.c.l.b16 %v3002
        %v3135 = vunpack.c.l.b16 %v3003
        %v3136 = vpack.c.b16 %v3073, %v3072
        %v3137 = vpack.c.b16 %v3075, %v3074
        %v3138 = vpack.c.b16 %v3077, %v3076
        %v3139 = vpack.c.b16 %v3079, %v3078
        %v3140 = vpack.c.b16 %v3081, %v3080
        %v3141 = vpack.c.b16 %v3083, %v3082
        %v3142 = vpack.c.b16 %v3085, %v3084
        %v3143 = vpack.c.b16 %v3087, %v3086
        %v3144 = vpack.c.b16 %v3089, %v3088
        %v3145 = vpack.c.b16 %v3091, %v3090
        %v3146 = vpack.c.b16 %v3093, %v3092
        %v3147 = vpack.c.b16 %v3095, %v3094
        %v3148 = vpack.c.b16 %v3097, %v3096
        %v3149 = vpack.c.b16 %v3099, %v3098
        %v3150 = vpack.c.b16 %v3101, %v3100
        %v3151 = vpack.c.b16 %v3103, %v3102
        %v3152 = vpack.c.b16 %v3105, %v3104
        %v3153 = vpack.c.b16 %v3107, %v3106
        %v3154 = vpack.c.b16 %v3109, %v3108
        %v3155 = vpack.c.b16 %v3111, %v3110
        %v3156 = vpack.c.b16 %v3113, %v3112
        %v3157 = vpack.c.b16 %v3115, %v3114
        %v3158 = vpack.c.b16 %v3117, %v3116
        %v3159 = vpack.c.b16 %v3119, %v3118
        %v3160 = vpack.c.b16 %v3121, %v3120
        %v3161 = vpack.c.b16 %v3123, %v3122
        %v3162 = vpack.c.b16 %v3125, %v3124
        %v3163 = vpack.c.b16 %v3127, %v3126
        %v3164 = vpack.c.b16 %v3129, %v3128
        %v3165 = vpack.c.b16 %v3131, %v3130
        %v3166 = vpack.c.b16 %v3133, %v3132
        %v3167 = vpack.c.b16 %v3135, %v3134
        %3200 = vmatpush.bf16.msra.mxu0 %v3143
        %3201 = vmatpush.bf16.msra.mxu0 %v3142
        %3202 = vmatpush.bf16.msra.mxu0 %v3141
        %3203 = vmatpush.bf16.msra.mxu0 %v3140
        %3204 = vmatpush.bf16.msra.mxu0 %v3139
        %3205 = vmatpush.bf16.msra.mxu0 %v3138
        %3206 = vmatpush.bf16.msra.mxu0 %v3137
        %3207 = vmatpush.bf16.msra.mxu0 %v3136
        %3208 = vmatmul.bf16.gmra.mxu0 %v2928
        %v3209 = vpop.f32.mrf.mxu0
        %v3210 = vadd.f32 %v3006, %v3209
        %v3211 = vpop.f32.mrf.mxu0
        %v3212 = vadd.f32 %v3006, %v3211
        %3213 = vmatmul.bf16.gmra.mxu0 %v2932
        %v3214 = vpop.f32.mrf.mxu0
        %v3215 = vadd.f32 %v3006, %v3214
        %v3216 = vpop.f32.mrf.mxu0
        %v3217 = vadd.f32 %v3006, %v3216
        %3218 = vmatmul.bf16.gmra.mxu0 %v2936
        %v3219 = vpop.f32.mrf.mxu0
        %v3220 = vadd.f32 %v3006, %v3219
        %v3221 = vpop.f32.mrf.mxu0
        %3222 = vdwg.mxu0
        %3223 = vmatpush.bf16.msra.mxu0 %v3151
        %3224 = vmatpush.bf16.msra.mxu0 %v3150
        %3225 = vmatpush.bf16.msra.mxu0 %v3149
        %3226 = vmatpush.bf16.msra.mxu0 %v3148
        %3227 = vmatpush.bf16.msra.mxu0 %v3147
        %3228 = vmatpush.bf16.msra.mxu0 %v3146
        %3229 = vmatpush.bf16.msra.mxu0 %v3145
        %3230 = vmatpush.bf16.msra.mxu0 %v3144
        %3231 = vmatmul.bf16.gmra.mxu0 %v2929
        %v3232 = vpop.f32.mrf.mxu0
        %v3233 = vadd.f32 %v3210, %v3232
        %v3234 = vpop.f32.mrf.mxu0
        %v3235 = vadd.f32 %v3212, %v3234
        %3236 = vmatmul.bf16.gmra.mxu0 %v2933
        %v3237 = vpop.f32.mrf.mxu0
        %v3238 = vadd.f32 %v3215, %v3237
        %v3239 = vpop.f32.mrf.mxu0
        %v3240 = vadd.f32 %v3217, %v3239
        %3241 = vmatmul.bf16.gmra.mxu0 %v2937
        %v3242 = vpop.f32.mrf.mxu0
        %v3243 = vadd.f32 %v3220, %v3242
        %v3244 = vpop.f32.mrf.mxu0
        %3245 = vdwg.mxu0
        %3246 = vmatpush.bf16.msra.mxu0 %v3159
        %3247 = vmatpush.bf16.msra.mxu0 %v3158
        %3248 = vmatpush.bf16.msra.mxu0 %v3157
        %3249 = vmatpush.bf16.msra.mxu0 %v3156
        %3250 = vmatpush.bf16.msra.mxu0 %v3155
        %3251 = vmatpush.bf16.msra.mxu0 %v3154
        %3252 = vmatpush.bf16.msra.mxu0 %v3153
        %3253 = vmatpush.bf16.msra.mxu0 %v3152
        %3254 = vmatmul.bf16.gmra.mxu0 %v2930
        %v3255 = vpop.f32.mrf.mxu0
        %v3256 = vadd.f32 %v3233, %v3255
        %v3257 = vpop.f32.mrf.mxu0
        %v3258 = vadd.f32 %v3235, %v3257
        %3259 = vmatmul.bf16.gmra.mxu0 %v2934
        %v3260 = vpop.f32.mrf.mxu0
        %v3261 = vadd.f32 %v3238, %v3260
        %v3262 = vpop.f32.mrf.mxu0
        %v3263 = vadd.f32 %v3240, %v3262
        %3264 = vmatmul.bf16.gmra.mxu0 %v2938
        %v3265 = vpop.f32.mrf.mxu0
        %v3266 = vadd.f32 %v3243, %v3265
        %v3267 = vpop.f32.mrf.mxu0
        %3268 = vdwg.mxu0
        %3269 = vmatpush.bf16.msra.mxu0 %v3167
        %3270 = vmatpush.bf16.msra.mxu0 %v3166
        %3271 = vmatpush.bf16.msra.mxu0 %v3165
        %3272 = vmatpush.bf16.msra.mxu0 %v3164
        %3273 = vmatpush.bf16.msra.mxu0 %v3163
        %3274 = vmatpush.bf16.msra.mxu0 %v3162
        %3275 = vmatpush.bf16.msra.mxu0 %v3161
        %3276 = vmatpush.bf16.msra.mxu0 %v3160
        %3277 = vmatmul.bf16.gmra.mxu0 %v2931
        %v3278 = vpop.f32.mrf.mxu0
        %v3279 = vadd.f32 %v3256, %v3278
        %v3280 = vpop.f32.mrf.mxu0
        %v3281 = vadd.f32 %v3258, %v3280
        %3282 = vmatmul.bf16.gmra.mxu0 %v2935
        %v3283 = vpop.f32.mrf.mxu0
        %v3284 = vadd.f32 %v3261, %v3283
        %v3285 = vpop.f32.mrf.mxu0
        %v3286 = vadd.f32 %v3263, %v3285
        %3287 = vmatmul.bf16.gmra.mxu0 %v2939
        %v3288 = vpop.f32.mrf.mxu0
        %v3289 = vadd.f32 %v3266, %v3288
        %v3290 = vpop.f32.mrf.mxu0
        %3291 = vdwg.mxu0
        %3292 = vst [vmem:[%s384] sm:$0xff] %v3279
        %3293 = vst [vmem:[%s384 + $0x8] sm:$0xff] %v3281
        %3294 = vst [vmem:[%s384 + $0x10] sm:$0xff] %v3284
        %3295 = vst [vmem:[%s384 + $0x18] sm:$0xff] %v3286
        %3296 = vst [vmem:[%s384 + $0x20] sm:$0xff] %v3289
        %s3297 = smul.u32 5, %s22
        %p3298 = scmp.lt.s32.totalorder %s3297, 9
        %s3299 = scalar_select %p3298, %s3297, 9
        %s3300 = smul.addr %s3299, 8
        %s3301 = scalar_lea.vmem %s9, %s3300
        // Predicated region
        $region69: #{generator_forward.1} parent=55 // pred_check
          %p3302 = pneg %p234
        $region70: #{generator_forward.1} parent=55 // pred_check_branch
          %3304 = sbr.rel (%p3302) target = $region72
        $region71: #{generator_forward.1} parent=55 // pred_region
          %s3305 = smul.u32 5, %s22
        $region72: #{generator_forward.1} parent=55 // pred_fallthru
          _
      $region56: #{generator_forward.1} parent=5 // pred_fallthru
        _
      %p3306 = scmp.le.s32.totalorder 2, %s17
      // Predicated region
      $region73: #{generator_forward.1} parent=5 // pred_check
        %p3307 = pneg %p3306
      $region74: #{generator_forward.1} parent=5 // pred_check_branch
        %3309 = sbr.rel (%p3307) target = $region76
      $region75: #{generator_forward.1} parent=5 // pred_region
        %s3310 = ssub.s32 %s17, 2
        // Predicated region
        $region77: #{generator_forward.1} parent=75 // pred_check
          %p3311 = pneg %p240
        $region78: #{generator_forward.1} parent=75 // pred_check_branch
          %3313 = sbr.rel (%p3311) target = $region80
        $region79: #{generator_forward.1} parent=75 // pred_region
          %s3314 = smul.u32 5, %s23
          %p3315 = scmp.lt.s32.totalorder %s3314, 9
          %s3316 = scalar_select %p3315, %s3314, 9
          %s3317 = smul.addr %s3316, 8
          %s3318 = scalar_lea.vmem %s9, %s3317
        $region80: #{generator_forward.1} parent=75 // pred_fallthru
          _
      $region76: #{generator_forward.1} parent=5 // pred_fallthru
        _
    $region6: #{generator_forward.1} parent=1 // loop_footer
      %s21 = sadd.s32 1, %s17
    $region7: #{generator_forward.1} parent=1 // loop_footer_branch
      %16 = sbr.rel target = $region3
    $region8: #{generator_forward.1} parent=1 // loop_exit
      _
    %3319 = vsyncpa [#allocation3], 1
    %s3320 = scalar_lea.sflag [#allocation3], 1
    %3321 = vsyncpa %s3320, 1
    %3322 = vsyncpa [#allocation5], 1

</llo_original>
